<compile_context>
chip_gen: v6e
topology: v6e:2x2x1
jax: 0.10.0
libtpu: 0.0.40
codegen_flags: <defaults>
</compile_context>

<pallas_src>
import jax
import jax.numpy as jnp
from jax.experimental import pallas as pl
from jax.experimental.pallas import tpu as pltpu

EPS = 1e-5


# ---------------------------------------------------------------------------
# In-kernel helper: build the 3x3-neighbourhood tap matrix of a flattened image
# ---------------------------------------------------------------------------
def _neighbor_taps(y2d, H, W):
    """y2d: (C, H*W) channels x flattened spatial (row-major).

    Returns (9*C, H*W) where row block k = (dy+1)*3 + (dx+1) holds, at column
    a*W + b, the value y[c, a+dy, b+dx] (zero outside the HxW image).
    Built with lane shifts (static concatenates) + iota boundary masks only.
    """
    C, L = y2d.shape
    lane = jax.lax.broadcasted_iota(jnp.int32, (1, L), 1)
    col = lane % W                                   # b index of each column
    blocks = []
    for dy in (-1, 0, 1):
        for dx in (-1, 0, 1):
            off = dy * W + dx
            if off == 0:
                t = y2d
            elif off > 0:
                t = jnp.concatenate(
                    [y2d[:, off:], jnp.zeros((C, off), y2d.dtype)], axis=1)
            else:
                t = jnp.concatenate(
                    [jnp.zeros((C, -off), y2d.dtype), y2d[:, :off]], axis=1)
            if dx == 1:                               # b+1 out of range at b=W-1
                t = jnp.where(col < (W - 1), t, 0.0)
            elif dx == -1:                            # b-1 out of range at b=0
                t = jnp.where(col > 0, t, 0.0)
            blocks.append(t)
    return jnp.concatenate(blocks, axis=0)            # (9C, L)


# ---------------------------------------------------------------------------
# Pallas kernels
# ---------------------------------------------------------------------------
def _make_stage1_kernel(N, C, H, W, Cout):
    """BN1 (batch stats) + ConvTranspose2d(C,Cout,4,2,1) + ReLU, and BN2
    scale/shift computed from the produced activations.  grid=(1,)."""
    HW = H * W

    def kernel(x_ref, g1_ref, bt1_ref, w1_ref, b1_ref, g2_ref, bt2_ref,
               h_ref, s2_ref, t2_ref):
        x = x_ref[...]                                 # (N, C, HW)

        # ---- BatchNorm2d(C): training-mode batch statistics, in-kernel ----
        acc = jnp.zeros((C, 1), jnp.float32)
        accq = jnp.zeros((C, 1), jnp.float32)
        for n in range(N):
            xn = x[n]                                  # (C, HW)
            acc = acc + jnp.sum(xn, axis=1, keepdims=True)
            accq = accq + jnp.sum(xn * xn, axis=1, keepdims=True)
        cnt = float(N * HW)
        mean1 = acc / cnt
        var1 = accq / cnt - mean1 * mean1              # biased var (training BN)
        scale1 = g1_ref[...] * jax.lax.rsqrt(var1 + EPS)
        shift1 = bt1_ref[...] - mean1 * scale1

        w_all = w1_ref[...]                            # (4*Cout, 9*C)
        b_all = b1_ref[...]                            # (4*Cout, 1)

        # ---- phase-decomposed deconv1 + ReLU, one matmul per image --------
        acc_s = jnp.zeros((Cout, 1), jnp.float32)
        acc_q = jnp.zeros((Cout, 1), jnp.float32)
        for n in range(N):
            y = x[n] * scale1 + shift1                 # BN1 applied (C, HW)
            taps = _neighbor_taps(y, H, W)             # (9C, HW)
            o = jnp.dot(w_all, taps, preferred_element_type=jnp.float32)
            o = jnp.maximum(o + b_all, 0.0)            # (4*Cout, HW), lane-dense
            h_ref[n] = o
            rs = jnp.sum(o, axis=1, keepdims=True)     # (4*Cout, 1)
            rq = jnp.sum(o * o, axis=1, keepdims=True)
            for p in range(4):
                acc_s = acc_s + rs[p * Cout:(p + 1) * Cout]
                acc_q = acc_q + rq[p * Cout:(p + 1) * Cout]

        # ---- BatchNorm2d(Cout) scale/shift from these activations ---------
        cnt2 = float(N * 4 * HW)
        mean2 = acc_s / cnt2
        var2 = acc_q / cnt2 - mean2 * mean2
        scale2 = g2_ref[...] * jax.lax.rsqrt(var2 + EPS)
        s2_ref[...] = scale2
        t2_ref[...] = bt2_ref[...] - mean2 * scale2

    return kernel


def _make_stage2_kernel(C, H, W, Cout):
    """BN2 affine + ConvTranspose2d(C,Cout,4,2,1) + ReLU + sigmoid.
    grid=(N,) "parallel": one image per grid step."""
    def kernel(h_ref, s2_ref, t2_ref, w2_ref, b2_ref, o_ref):
        y = h_ref[0] * s2_ref[...] + t2_ref[...]       # (C, HW) BN2 applied
        taps = _neighbor_taps(y, H, W)                 # (9C, HW)
        o = jnp.dot(w2_ref[...], taps, preferred_element_type=jnp.float32)
        o = jnp.maximum(o + b2_ref[...], 0.0)          # ReLU
        o_ref[0] = jax.nn.sigmoid(o)                   # (4*Cout, HW), lane-dense

    return kernel


# ---------------------------------------------------------------------------
# Wrapper-side (tiny, one-time) weight preparation and phase re-interleave
# ---------------------------------------------------------------------------
def _phase_weight_matrix(w_t):
    """ConvTranspose2d weight (Cin, Cout, 4, 4), stride 2, pad 1 ->
    (4*Cout, 9*Cin) matrix for the phase-decomposed matmul.
      row r = (py*2 + px)*Cout + co     (output pixel oy=2a+py, ox=2b+px)
      col k = ((dy+1)*3 + (dx+1))*Cin + ci  (tap at input offset (dy, dx))."""
    cin, cout = w_t.shape[0], w_t.shape[1]
    w = jnp.zeros((4 * cout, 9 * cin), jnp.float32)
    for py in range(2):
        for px in range(2):
            r0 = (py * 2 + px) * cout
            for dy in (py - 1, py):
                for dx in (px - 1, px):
                    ky = 1 + py - 2 * dy
                    kx = 1 + px - 2 * dx
                    c0 = ((dy + 1) * 3 + (dx + 1)) * cin
                    w = w.at[r0:r0 + cout, c0:c0 + cin].set(w_t[:, :, ky, kx].T)
    return w


def _phase_to_nchw(o, cout, H, W):
    """(N, 4*cout, H*W) phase-major rows -> (N, cout, 2H, 2W) (depth-to-space)."""
    N = o.shape[0]
    t = o.reshape(N, 2, 2, cout, H, W)                 # [n, py, px, co, a, b]
    t = jnp.transpose(t, (0, 3, 4, 1, 5, 2))           # [n, co, a, py, b, px]
    return t.reshape(N, cout, 2 * H, 2 * W)


def upsample_conv_forward(x, params):
    N, C1, H1, W1 = x.shape
    C2 = params["w1"].shape[1]                         # 8
    C3 = params["w2"].shape[1]                         # 2
    H2, W2 = 2 * H1, 2 * W1

    w1m = _phase_weight_matrix(params["w1"])           # (32, 144)
    w2m = _phase_weight_matrix(params["w2"])           # (8, 72)
    b1a = jnp.tile(params["b1"].reshape(-1, 1), (4, 1))  # (32, 1)
    b2a = jnp.tile(params["b2"].reshape(-1, 1), (4, 1))  # (8, 1)
    g1 = params["bn1_gamma"].reshape(-1, 1)
    be1 = params["bn1_beta"].reshape(-1, 1)
    g2 = params["bn2_gamma"].reshape(-1, 1)
    be2 = params["bn2_beta"].reshape(-1, 1)

    x_flat = x.reshape(N, C1, H1 * W1)                 # free (contiguous) reshape

    def full(s):
        return pl.BlockSpec(s, lambda i: (0,) * len(s))

    # ---- stage 1: BN1 + deconv1 + ReLU (+ BN2 stats) -----------------------
    # Needs the whole batch for the BN statistics -> single grid step.
    hph, bn2_scale, bn2_shift = pl.pallas_call(
        _make_stage1_kernel(N, C1, H1, W1, C2),
        out_shape=(jax.ShapeDtypeStruct((N, 4 * C2, H1 * W1), jnp.float32),
                   jax.ShapeDtypeStruct((C2, 1), jnp.float32),
                   jax.ShapeDtypeStruct((C2, 1), jnp.float32)),
        grid=(1,),
        in_specs=[full((N, C1, H1 * W1)), full((C1, 1)), full((C1, 1)),
                  full((4 * C2, 9 * C1)), full((4 * C2, 1)),
                  full((C2, 1)), full((C2, 1))],
        out_specs=(full((N, 4 * C2, H1 * W1)), full((C2, 1)), full((C2, 1))),
        compiler_params=pltpu.CompilerParams(
            dimension_semantics=("arbitrary",)),
    )(x_flat, g1, be1, w1m, b1a, g2, be2)

    # tiny (64 KB) phase -> NCHW interleave: the only XLA glue between kernels
    h = _phase_to_nchw(hph, C2, H1, W1).reshape(N, C2, H2 * W2)

    # ---- stage 2: BN2 + deconv2 + ReLU + sigmoid ---------------------------
    oph = pl.pallas_call(
        _make_stage2_kernel(C2, H2, W2, C3),
        out_shape=jax.ShapeDtypeStruct((N, 4 * C3, H2 * W2), jnp.float32),
        grid=(N,),
        in_specs=[pl.BlockSpec((1, C2, H2 * W2), lambda n: (n, 0, 0)),
                  pl.BlockSpec((C2, 1), lambda n: (0, 0)),
                  pl.BlockSpec((C2, 1), lambda n: (0, 0)),
                  pl.BlockSpec((4 * C3, 9 * C2), lambda n: (0, 0)),
                  pl.BlockSpec((4 * C3, 1), lambda n: (0, 0))],
        out_specs=pl.BlockSpec((1, 4 * C3, H2 * W2), lambda n: (n, 0, 0)),
        compiler_params=pltpu.CompilerParams(
            dimension_semantics=("parallel",)),
    )(h, bn2_scale, bn2_shift, w2m, b2a)

    return _phase_to_nchw(oph, C3, H2, W2)             # (N, 2, 4H, 4W)


# ---------------------------------------------------------------------------
# Pure-JAX reference (correctness check)
# ---------------------------------------------------------------------------
def _ref_bn(x, gamma, beta):
    mean = jnp.mean(x, axis=(0, 2, 3), keepdims=True)
    var = jnp.mean((x - mean) ** 2, axis=(0, 2, 3), keepdims=True)
    return gamma[None, :, None, None] * (x - mean) * jax.lax.rsqrt(var + EPS) \
        + beta[None, :, None, None]


def _ref_deconv(x, w_t, b):
    w_conv = jnp.transpose(w_t[:, :, ::-1, ::-1], (1, 0, 2, 3))   # (Cout,Cin,4,4)
    y = jax.lax.conv_general_dilated(
        x, w_conv, window_strides=(1, 1), padding=((2, 2), (2, 2)),
        lhs_dilation=(2, 2), dimension_numbers=("NCHW", "OIHW", "NCHW"))
    return y + b[None, :, None, None]


def _ref_forward(x, p):
    x = _ref_bn(x, p["bn1_gamma"], p["bn1_beta"])
    x = jnp.maximum(_ref_deconv(x, p["w1"], p["b1"]), 0.0)
    x = _ref_bn(x, p["bn2_gamma"], p["bn2_beta"])
    x = jnp.maximum(_ref_deconv(x, p["w2"], p["b2"]), 0.0)
    return jax.nn.sigmoid(x)


# ---------------------------------------------------------------------------
if __name__ == "__main__":
    key = jax.random.PRNGKey(0)
    kx, k1, k2, k3, k4 = jax.random.split(key, 5)

    N, C, H, W = 2, 16, 16, 16
    x = jax.random.normal(kx, (N, C, H, W), dtype=jnp.float32)

    params = {
        # ConvTranspose2d(16, 8, 4): weight (Cin=16, Cout=8, 4, 4)
        "w1": jax.random.uniform(k1, (16, 8, 4, 4), jnp.float32, -0.0625, 0.0625),
        "b1": jax.random.uniform(k2, (8,), jnp.float32, -0.0625, 0.0625),
        # ConvTranspose2d(8, 2, 4): weight (Cin=8, Cout=2, 4, 4)
        "w2": jax.random.uniform(k3, (8, 2, 4, 4), jnp.float32, -0.0884, 0.0884),
        "b2": jax.random.uniform(k4, (2,), jnp.float32, -0.0884, 0.0884),
        # BatchNorm2d defaults: gamma=1, beta=0
        "bn1_gamma": jnp.ones((16,), jnp.float32),
        "bn1_beta": jnp.zeros((16,), jnp.float32),
        "bn2_gamma": jnp.ones((8,), jnp.float32),
        "bn2_beta": jnp.zeros((8,), jnp.float32),
    }

    fwd = jax.jit(upsample_conv_forward)
    out = jax.block_until_ready(fwd(x, params))

    ref = jax.block_until_ready(_ref_forward(x, params))
    assert out.shape == (N, 2, 4 * H, 4 * W), out.shape
    assert jnp.allclose(out, ref, atol=1e-4, rtol=1e-4), \
        float(jnp.max(jnp.abs(out - ref)))

    print("KERNEL_OK")
</pallas_src>

<mosaic_0001>
module attributes {stable_mosaic.version = 11 : i64} {
  func.func @kernel(%arg0: i32, %arg1: memref<2x16x256xf32, #tpu.memory_space<vmem>>, %arg2: memref<16x1xf32, #tpu.memory_space<vmem>>, %arg3: memref<16x1xf32, #tpu.memory_space<vmem>>, %arg4: memref<32x144xf32, #tpu.memory_space<vmem>>, %arg5: memref<32x1xf32, #tpu.memory_space<vmem>>, %arg6: memref<8x1xf32, #tpu.memory_space<vmem>>, %arg7: memref<8x1xf32, #tpu.memory_space<vmem>>, %arg8: memref<2x32x256xf32, #tpu.memory_space<vmem>>, %arg9: memref<8x1xf32, #tpu.memory_space<vmem>>, %arg10: memref<8x1xf32, #tpu.memory_space<vmem>>) attributes {dimension_semantics = [#tpu.dimension_semantics<arbitrary>], iteration_bounds = array<i64: 1>, scalar_prefetch = 0 : i64, scratch_operands = 0 : i64, tpu.core_type = #tpu.core_type<tc>, window_params = [{pipeline_mode = #tpu.pipeline_mode<synchronous>, transform_indices = @transform_0, window_bounds = array<i64: 2, 16, 256>}, {pipeline_mode = #tpu.pipeline_mode<synchronous>, transform_indices = @transform_1, window_bounds = array<i64: 16, 1>}, {pipeline_mode = #tpu.pipeline_mode<synchronous>, transform_indices = @transform_2, window_bounds = array<i64: 16, 1>}, {pipeline_mode = #tpu.pipeline_mode<synchronous>, transform_indices = @transform_3, window_bounds = array<i64: 32, 144>}, {pipeline_mode = #tpu.pipeline_mode<synchronous>, transform_indices = @transform_4, window_bounds = array<i64: 32, 1>}, {pipeline_mode = #tpu.pipeline_mode<synchronous>, transform_indices = @transform_5, window_bounds = array<i64: 8, 1>}, {pipeline_mode = #tpu.pipeline_mode<synchronous>, transform_indices = @transform_6, window_bounds = array<i64: 8, 1>}, {pipeline_mode = #tpu.pipeline_mode<synchronous>, transform_indices = @transform_7, window_bounds = array<i64: 2, 32, 256>}, {pipeline_mode = #tpu.pipeline_mode<synchronous>, transform_indices = @transform_8, window_bounds = array<i64: 8, 1>}, {pipeline_mode = #tpu.pipeline_mode<synchronous>, transform_indices = @transform_9, window_bounds = array<i64: 8, 1>}]} {
    %c0 = arith.constant 0 : index
    %c0_0 = arith.constant 0 : index
    %c0_1 = arith.constant 0 : index
    %0 = vector.load %arg1[%c0, %c0_0, %c0_1] : memref<2x16x256xf32, #tpu.memory_space<vmem>>, vector<2x16x256xf32>
    %cst = arith.constant 0.000000e+00 : f32
    %1 = vector.broadcast %cst : f32 to vector<16x1xf32>
    %cst_2 = arith.constant 0.000000e+00 : f32
    %2 = vector.broadcast %cst_2 : f32 to vector<16x1xf32>
    %3 = vector.extract_strided_slice %0 {offsets = [0, 0, 0], sizes = [1, 16, 256], strides = [1, 1, 1]} : vector<2x16x256xf32> to vector<1x16x256xf32>
    %4 = vector.shape_cast %3 : vector<1x16x256xf32> to vector<16x256xf32>
    %cst_3 = arith.constant dense<0.000000e+00> : vector<16xf32>
    %5 = vector.multi_reduction <add>, %4, %cst_3 [1] : vector<16x256xf32> to vector<16xf32>
    %6 = vector.shape_cast %5 : vector<16xf32> to vector<16x1xf32>
    %7 = arith.addf %1, %6 : vector<16x1xf32>
    %8 = arith.mulf %4, %4 : vector<16x256xf32>
    %cst_4 = arith.constant dense<0.000000e+00> : vector<16xf32>
    %9 = vector.multi_reduction <add>, %8, %cst_4 [1] : vector<16x256xf32> to vector<16xf32>
    %10 = vector.shape_cast %9 : vector<16xf32> to vector<16x1xf32>
    %11 = arith.addf %2, %10 : vector<16x1xf32>
    %12 = vector.extract_strided_slice %0 {offsets = [1, 0, 0], sizes = [1, 16, 256], strides = [1, 1, 1]} : vector<2x16x256xf32> to vector<1x16x256xf32>
    %13 = vector.shape_cast %12 : vector<1x16x256xf32> to vector<16x256xf32>
    %cst_5 = arith.constant dense<0.000000e+00> : vector<16xf32>
    %14 = vector.multi_reduction <add>, %13, %cst_5 [1] : vector<16x256xf32> to vector<16xf32>
    %15 = vector.shape_cast %14 : vector<16xf32> to vector<16x1xf32>
    %16 = arith.addf %7, %15 : vector<16x1xf32>
    %17 = arith.mulf %13, %13 : vector<16x256xf32>
    %cst_6 = arith.constant dense<0.000000e+00> : vector<16xf32>
    %18 = vector.multi_reduction <add>, %17, %cst_6 [1] : vector<16x256xf32> to vector<16xf32>
    %19 = vector.shape_cast %18 : vector<16xf32> to vector<16x1xf32>
    %20 = arith.addf %11, %19 : vector<16x1xf32>
    %cst_7 = arith.constant 5.120000e+02 : f32
    %21 = vector.broadcast %cst_7 : f32 to vector<16x1xf32>
    %22 = arith.divf %16, %21 : vector<16x1xf32>
    %cst_8 = arith.constant 5.120000e+02 : f32
    %23 = vector.broadcast %cst_8 : f32 to vector<16x1xf32>
    %24 = arith.divf %20, %23 : vector<16x1xf32>
    %25 = arith.mulf %22, %22 : vector<16x1xf32>
    %26 = arith.subf %24, %25 : vector<16x1xf32>
    %c0_9 = arith.constant 0 : index
    %c0_10 = arith.constant 0 : index
    %27 = vector.load %arg2[%c0_9, %c0_10] : memref<16x1xf32, #tpu.memory_space<vmem>>, vector<16x1xf32>
    %cst_11 = arith.constant 9.99999974E-6 : f32
    %28 = vector.broadcast %cst_11 : f32 to vector<16x1xf32>
    %29 = arith.addf %26, %28 : vector<16x1xf32>
    %30 = math.rsqrt %29 : vector<16x1xf32>
    %31 = arith.mulf %27, %30 : vector<16x1xf32>
    %c0_12 = arith.constant 0 : index
    %c0_13 = arith.constant 0 : index
    %32 = vector.load %arg3[%c0_12, %c0_13] : memref<16x1xf32, #tpu.memory_space<vmem>>, vector<16x1xf32>
    %33 = arith.mulf %22, %31 : vector<16x1xf32>
    %34 = arith.subf %32, %33 : vector<16x1xf32>
    %c0_14 = arith.constant 0 : index
    %c0_15 = arith.constant 0 : index
    %35 = vector.load %arg4[%c0_14, %c0_15] : memref<32x144xf32, #tpu.memory_space<vmem>>, vector<32x144xf32>
    %c0_16 = arith.constant 0 : index
    %c0_17 = arith.constant 0 : index
    %36 = vector.load %arg5[%c0_16, %c0_17] : memref<32x1xf32, #tpu.memory_space<vmem>>, vector<32x1xf32>
    %cst_18 = arith.constant 0.000000e+00 : f32
    %37 = vector.broadcast %cst_18 : f32 to vector<8x1xf32>
    %cst_19 = arith.constant 0.000000e+00 : f32
    %38 = vector.broadcast %cst_19 : f32 to vector<8x1xf32>
    %39 = vector.extract_strided_slice %0 {offsets = [0, 0, 0], sizes = [1, 16, 256], strides = [1, 1, 1]} : vector<2x16x256xf32> to vector<1x16x256xf32>
    %40 = vector.shape_cast %39 : vector<1x16x256xf32> to vector<16x256xf32>
    %41 = vector.broadcast %31 : vector<16x1xf32> to vector<16x256xf32>
    %42 = arith.mulf %40, %41 : vector<16x256xf32>
    %43 = vector.broadcast %34 : vector<16x1xf32> to vector<16x256xf32>
    %44 = arith.addf %42, %43 : vector<16x256xf32>
    %45 = tpu.iota {dimensions = array<i32: 1>} : vector<1x256xi32>
    %c16_i32 = arith.constant 16 : i32
    %c0_i32 = arith.constant 0 : i32
    %46 = arith.cmpi eq, %c16_i32, %c0_i32 : i32
    %c1_i32 = arith.constant 1 : i32
    %47 = arith.select %46, %c1_i32, %c16_i32 : i32
    %48 = vector.broadcast %47 : i32 to vector<1x256xi32>
    %49 = arith.remsi %45, %48 : vector<1x256xi32>
    %c0_i32_20 = arith.constant 0 : i32
    %50 = vector.broadcast %c0_i32_20 : i32 to vector<1x256xi32>
    %51 = arith.cmpi ne, %49, %50 : vector<1x256xi32>
    %c0_i32_21 = arith.constant 0 : i32
    %52 = vector.broadcast %c0_i32_21 : i32 to vector<1x256xi32>
    %53 = arith.cmpi slt, %49, %52 : vector<1x256xi32>
    %c0_i32_22 = arith.constant 0 : i32
    %54 = arith.cmpi slt, %47, %c0_i32_22 : i32
    %55 = vector.broadcast %54 : i1 to vector<1x256xi1>
    %56 = vector.broadcast %55 : vector<1x256xi1> to vector<1x256xi1>
    %57 = arith.xori %53, %56 : vector<1x256xi1>
    %58 = arith.andi %57, %51 : vector<1x256xi1>
    %59 = vector.broadcast %47 : i32 to vector<1x256xi32>
    %60 = arith.addi %49, %59 : vector<1x256xi32>
    %61 = arith.select %58, %60, %49 : vector<1x256xi1>, vector<1x256xi32>
    %cst_23 = arith.constant 0.000000e+00 : f32
    %62 = vector.broadcast %cst_23 : f32 to vector<16x17xf32>
    %63 = vector.extract_strided_slice %44 {offsets = [0, 0], sizes = [16, 239], strides = [1, 1]} : vector<16x256xf32> to vector<16x239xf32>
    %64 = tpu.concatenate %62, %63 in 1 : vector<16x17xf32>, vector<16x239xf32> -> vector<16x256xf32>
    %c0_i32_24 = arith.constant 0 : i32
    %65 = vector.broadcast %c0_i32_24 : i32 to vector<1x256xi32>
    %66 = arith.cmpi sgt, %61, %65 : vector<1x256xi32>
    %cst_25 = arith.constant 0.000000e+00 : f32
    %67 = vector.shape_cast %66 : vector<1x256xi1> to vector<1x256xi1>
    %68 = vector.broadcast %67 : vector<1x256xi1> to vector<16x256xi1>
    %69 = vector.broadcast %cst_25 : f32 to vector<16x256xf32>
    %70 = arith.select %68, %64, %69 : vector<16x256xi1>, vector<16x256xf32>
    %cst_26 = arith.constant 0.000000e+00 : f32
    %71 = vector.broadcast %cst_26 : f32 to vector<16x16xf32>
    %72 = vector.extract_strided_slice %44 {offsets = [0, 0], sizes = [16, 240], strides = [1, 1]} : vector<16x256xf32> to vector<16x240xf32>
    %73 = tpu.concatenate %71, %72 in 1 : vector<16x16xf32>, vector<16x240xf32> -> vector<16x256xf32>
    %cst_27 = arith.constant 0.000000e+00 : f32
    %74 = vector.broadcast %cst_27 : f32 to vector<16x15xf32>
    %75 = vector.extract_strided_slice %44 {offsets = [0, 0], sizes = [16, 241], strides = [1, 1]} : vector<16x256xf32> to vector<16x241xf32>
    %76 = tpu.concatenate %74, %75 in 1 : vector<16x15xf32>, vector<16x241xf32> -> vector<16x256xf32>
    %c15_i32 = arith.constant 15 : i32
    %77 = vector.broadcast %c15_i32 : i32 to vector<1x256xi32>
    %78 = arith.cmpi slt, %61, %77 : vector<1x256xi32>
    %cst_28 = arith.constant 0.000000e+00 : f32
    %79 = vector.shape_cast %78 : vector<1x256xi1> to vector<1x256xi1>
    %80 = vector.broadcast %79 : vector<1x256xi1> to vector<16x256xi1>
    %81 = vector.broadcast %cst_28 : f32 to vector<16x256xf32>
    %82 = arith.select %80, %76, %81 : vector<16x256xi1>, vector<16x256xf32>
    %cst_29 = arith.constant 0.000000e+00 : f32
    %83 = vector.broadcast %cst_29 : f32 to vector<16x1xf32>
    %84 = vector.extract_strided_slice %44 {offsets = [0, 0], sizes = [16, 255], strides = [1, 1]} : vector<16x256xf32> to vector<16x255xf32>
    %85 = tpu.concatenate %83, %84 in 1 : vector<16x1xf32>, vector<16x255xf32> -> vector<16x256xf32>
    %c0_i32_30 = arith.constant 0 : i32
    %86 = vector.broadcast %c0_i32_30 : i32 to vector<1x256xi32>
    %87 = arith.cmpi sgt, %61, %86 : vector<1x256xi32>
    %cst_31 = arith.constant 0.000000e+00 : f32
    %88 = vector.shape_cast %87 : vector<1x256xi1> to vector<1x256xi1>
    %89 = vector.broadcast %88 : vector<1x256xi1> to vector<16x256xi1>
    %90 = vector.broadcast %cst_31 : f32 to vector<16x256xf32>
    %91 = arith.select %89, %85, %90 : vector<16x256xi1>, vector<16x256xf32>
    %92 = vector.extract_strided_slice %44 {offsets = [0, 1], sizes = [16, 255], strides = [1, 1]} : vector<16x256xf32> to vector<16x255xf32>
    %cst_32 = arith.constant 0.000000e+00 : f32
    %93 = vector.broadcast %cst_32 : f32 to vector<16x1xf32>
    %94 = tpu.concatenate %92, %93 in 1 : vector<16x255xf32>, vector<16x1xf32> -> vector<16x256xf32>
    %c15_i32_33 = arith.constant 15 : i32
    %95 = vector.broadcast %c15_i32_33 : i32 to vector<1x256xi32>
    %96 = arith.cmpi slt, %61, %95 : vector<1x256xi32>
    %cst_34 = arith.constant 0.000000e+00 : f32
    %97 = vector.shape_cast %96 : vector<1x256xi1> to vector<1x256xi1>
    %98 = vector.broadcast %97 : vector<1x256xi1> to vector<16x256xi1>
    %99 = vector.broadcast %cst_34 : f32 to vector<16x256xf32>
    %100 = arith.select %98, %94, %99 : vector<16x256xi1>, vector<16x256xf32>
    %101 = vector.extract_strided_slice %44 {offsets = [0, 15], sizes = [16, 241], strides = [1, 1]} : vector<16x256xf32> to vector<16x241xf32>
    %cst_35 = arith.constant 0.000000e+00 : f32
    %102 = vector.broadcast %cst_35 : f32 to vector<16x15xf32>
    %103 = tpu.concatenate %101, %102 in 1 : vector<16x241xf32>, vector<16x15xf32> -> vector<16x256xf32>
    %c0_i32_36 = arith.constant 0 : i32
    %104 = vector.broadcast %c0_i32_36 : i32 to vector<1x256xi32>
    %105 = arith.cmpi sgt, %61, %104 : vector<1x256xi32>
    %cst_37 = arith.constant 0.000000e+00 : f32
    %106 = vector.shape_cast %105 : vector<1x256xi1> to vector<1x256xi1>
    %107 = vector.broadcast %106 : vector<1x256xi1> to vector<16x256xi1>
    %108 = vector.broadcast %cst_37 : f32 to vector<16x256xf32>
    %109 = arith.select %107, %103, %108 : vector<16x256xi1>, vector<16x256xf32>
    %110 = vector.extract_strided_slice %44 {offsets = [0, 16], sizes = [16, 240], strides = [1, 1]} : vector<16x256xf32> to vector<16x240xf32>
    %cst_38 = arith.constant 0.000000e+00 : f32
    %111 = vector.broadcast %cst_38 : f32 to vector<16x16xf32>
    %112 = tpu.concatenate %110, %111 in 1 : vector<16x240xf32>, vector<16x16xf32> -> vector<16x256xf32>
    %113 = vector.extract_strided_slice %44 {offsets = [0, 17], sizes = [16, 239], strides = [1, 1]} : vector<16x256xf32> to vector<16x239xf32>
    %cst_39 = arith.constant 0.000000e+00 : f32
    %114 = vector.broadcast %cst_39 : f32 to vector<16x17xf32>
    %115 = tpu.concatenate %113, %114 in 1 : vector<16x239xf32>, vector<16x17xf32> -> vector<16x256xf32>
    %c15_i32_40 = arith.constant 15 : i32
    %116 = vector.broadcast %c15_i32_40 : i32 to vector<1x256xi32>
    %117 = arith.cmpi slt, %61, %116 : vector<1x256xi32>
    %cst_41 = arith.constant 0.000000e+00 : f32
    %118 = vector.shape_cast %117 : vector<1x256xi1> to vector<1x256xi1>
    %119 = vector.broadcast %118 : vector<1x256xi1> to vector<16x256xi1>
    %120 = vector.broadcast %cst_41 : f32 to vector<16x256xf32>
    %121 = arith.select %119, %115, %120 : vector<16x256xi1>, vector<16x256xf32>
    %122 = tpu.concatenate %70, %73, %82, %91, %44, %100, %109, %112, %121 in 0 : vector<16x256xf32>, vector<16x256xf32>, vector<16x256xf32>, vector<16x256xf32>, vector<16x256xf32>, vector<16x256xf32>, vector<16x256xf32>, vector<16x256xf32>, vector<16x256xf32> -> vector<144x256xf32>
    %cst_42 = arith.constant dense<0.000000e+00> : vector<32x256xf32>
    %123 = tpu.matmul %35, %122, %cst_42 {dimension_numbers = #tpu.dot_dimension_numbers<[1], [0], [0], [1], [0, 0, 1, 1], [], []>} : vector<32x144xf32>, vector<144x256xf32>, vector<32x256xf32> -> vector<32x256xf32>
    %124 = vector.broadcast %36 : vector<32x1xf32> to vector<32x256xf32>
    %125 = arith.addf %123, %124 : vector<32x256xf32>
    %cst_43 = arith.constant 0.000000e+00 : f32
    %126 = vector.broadcast %cst_43 : f32 to vector<32x256xf32>
    %127 = arith.maximumf %125, %126 : vector<32x256xf32>
    %c0_44 = arith.constant 0 : index
    %c0_45 = arith.constant 0 : index
    %c0_46 = arith.constant 0 : index
    %128 = vector.load %arg8[%c0_44, %c0_45, %c0_46] : memref<2x32x256xf32, #tpu.memory_space<vmem>>, vector<1x32x256xf32>
    %129 = vector.shape_cast %128 : vector<1x32x256xf32> to vector<32x256xf32>
    %130 = vector.shape_cast %127 : vector<32x256xf32> to vector<1x32x256xf32>
    tpu.vector_store %arg8[%c0_44, %c0_45, %c0_46], %130 {strides = array<i32>} : memref<2x32x256xf32, #tpu.memory_space<vmem>>, vector<1x32x256xf32>,
    %cst_47 = arith.constant dense<0.000000e+00> : vector<32xf32>
    %131 = vector.multi_reduction <add>, %127, %cst_47 [1] : vector<32x256xf32> to vector<32xf32>
    %132 = vector.shape_cast %131 : vector<32xf32> to vector<32x1xf32>
    %133 = arith.mulf %127, %127 : vector<32x256xf32>
    %cst_48 = arith.constant dense<0.000000e+00> : vector<32xf32>
    %134 = vector.multi_reduction <add>, %133, %cst_48 [1] : vector<32x256xf32> to vector<32xf32>
    %135 = vector.shape_cast %134 : vector<32xf32> to vector<32x1xf32>
    %136 = vector.extract_strided_slice %132 {offsets = [0, 0], sizes = [8, 1], strides = [1, 1]} : vector<32x1xf32> to vector<8x1xf32>
    %137 = arith.addf %37, %136 : vector<8x1xf32>
    %138 = vector.extract_strided_slice %135 {offsets = [0, 0], sizes = [8, 1], strides = [1, 1]} : vector<32x1xf32> to vector<8x1xf32>
    %139 = arith.addf %38, %138 : vector<8x1xf32>
    %140 = vector.extract_strided_slice %132 {offsets = [8, 0], sizes = [8, 1], strides = [1, 1]} : vector<32x1xf32> to vector<8x1xf32>
    %141 = arith.addf %137, %140 : vector<8x1xf32>
    %142 = vector.extract_strided_slice %135 {offsets = [8, 0], sizes = [8, 1], strides = [1, 1]} : vector<32x1xf32> to vector<8x1xf32>
    %143 = arith.addf %139, %142 : vector<8x1xf32>
    %144 = vector.extract_strided_slice %132 {offsets = [16, 0], sizes = [8, 1], strides = [1, 1]} : vector<32x1xf32> to vector<8x1xf32>
    %145 = arith.addf %141, %144 : vector<8x1xf32>
    %146 = vector.extract_strided_slice %135 {offsets = [16, 0], sizes = [8, 1], strides = [1, 1]} : vector<32x1xf32> to vector<8x1xf32>
    %147 = arith.addf %143, %146 : vector<8x1xf32>
    %148 = vector.extract_strided_slice %132 {offsets = [24, 0], sizes = [8, 1], strides = [1, 1]} : vector<32x1xf32> to vector<8x1xf32>
    %149 = arith.addf %145, %148 : vector<8x1xf32>
    %150 = vector.extract_strided_slice %135 {offsets = [24, 0], sizes = [8, 1], strides = [1, 1]} : vector<32x1xf32> to vector<8x1xf32>
    %151 = arith.addf %147, %150 : vector<8x1xf32>
    %152 = vector.extract_strided_slice %0 {offsets = [1, 0, 0], sizes = [1, 16, 256], strides = [1, 1, 1]} : vector<2x16x256xf32> to vector<1x16x256xf32>
    %153 = vector.shape_cast %152 : vector<1x16x256xf32> to vector<16x256xf32>
    %154 = vector.broadcast %31 : vector<16x1xf32> to vector<16x256xf32>
    %155 = arith.mulf %153, %154 : vector<16x256xf32>
    %156 = vector.broadcast %34 : vector<16x1xf32> to vector<16x256xf32>
    %157 = arith.addf %155, %156 : vector<16x256xf32>
    %158 = tpu.iota {dimensions = array<i32: 1>} : vector<1x256xi32>
    %c16_i32_49 = arith.constant 16 : i32
    %c0_i32_50 = arith.constant 0 : i32
    %159 = arith.cmpi eq, %c16_i32_49, %c0_i32_50 : i32
    %c1_i32_51 = arith.constant 1 : i32
    %160 = arith.select %159, %c1_i32_51, %c16_i32_49 : i32
    %161 = vector.broadcast %160 : i32 to vector<1x256xi32>
    %162 = arith.remsi %158, %161 : vector<1x256xi32>
    %c0_i32_52 = arith.constant 0 : i32
    %163 = vector.broadcast %c0_i32_52 : i32 to vector<1x256xi32>
    %164 = arith.cmpi ne, %162, %163 : vector<1x256xi32>
    %c0_i32_53 = arith.constant 0 : i32
    %165 = vector.broadcast %c0_i32_53 : i32 to vector<1x256xi32>
    %166 = arith.cmpi slt, %162, %165 : vector<1x256xi32>
    %c0_i32_54 = arith.constant 0 : i32
    %167 = arith.cmpi slt, %160, %c0_i32_54 : i32
    %168 = vector.broadcast %167 : i1 to vector<1x256xi1>
    %169 = vector.broadcast %168 : vector<1x256xi1> to vector<1x256xi1>
    %170 = arith.xori %166, %169 : vector<1x256xi1>
    %171 = arith.andi %170, %164 : vector<1x256xi1>
    %172 = vector.broadcast %160 : i32 to vector<1x256xi32>
    %173 = arith.addi %162, %172 : vector<1x256xi32>
    %174 = arith.select %171, %173, %162 : vector<1x256xi1>, vector<1x256xi32>
    %cst_55 = arith.constant 0.000000e+00 : f32
    %175 = vector.broadcast %cst_55 : f32 to vector<16x17xf32>
    %176 = vector.extract_strided_slice %157 {offsets = [0, 0], sizes = [16, 239], strides = [1, 1]} : vector<16x256xf32> to vector<16x239xf32>
    %177 = tpu.concatenate %175, %176 in 1 : vector<16x17xf32>, vector<16x239xf32> -> vector<16x256xf32>
    %c0_i32_56 = arith.constant 0 : i32
    %178 = vector.broadcast %c0_i32_56 : i32 to vector<1x256xi32>
    %179 = arith.cmpi sgt, %174, %178 : vector<1x256xi32>
    %cst_57 = arith.constant 0.000000e+00 : f32
    %180 = vector.shape_cast %179 : vector<1x256xi1> to vector<1x256xi1>
    %181 = vector.broadcast %180 : vector<1x256xi1> to vector<16x256xi1>
    %182 = vector.broadcast %cst_57 : f32 to vector<16x256xf32>
    %183 = arith.select %181, %177, %182 : vector<16x256xi1>, vector<16x256xf32>
    %cst_58 = arith.constant 0.000000e+00 : f32
    %184 = vector.broadcast %cst_58 : f32 to vector<16x16xf32>
    %185 = vector.extract_strided_slice %157 {offsets = [0, 0], sizes = [16, 240], strides = [1, 1]} : vector<16x256xf32> to vector<16x240xf32>
    %186 = tpu.concatenate %184, %185 in 1 : vector<16x16xf32>, vector<16x240xf32> -> vector<16x256xf32>
    %cst_59 = arith.constant 0.000000e+00 : f32
    %187 = vector.broadcast %cst_59 : f32 to vector<16x15xf32>
    %188 = vector.extract_strided_slice %157 {offsets = [0, 0], sizes = [16, 241], strides = [1, 1]} : vector<16x256xf32> to vector<16x241xf32>
    %189 = tpu.concatenate %187, %188 in 1 : vector<16x15xf32>, vector<16x241xf32> -> vector<16x256xf32>
    %c15_i32_60 = arith.constant 15 : i32
    %190 = vector.broadcast %c15_i32_60 : i32 to vector<1x256xi32>
    %191 = arith.cmpi slt, %174, %190 : vector<1x256xi32>
    %cst_61 = arith.constant 0.000000e+00 : f32
    %192 = vector.shape_cast %191 : vector<1x256xi1> to vector<1x256xi1>
    %193 = vector.broadcast %192 : vector<1x256xi1> to vector<16x256xi1>
    %194 = vector.broadcast %cst_61 : f32 to vector<16x256xf32>
    %195 = arith.select %193, %189, %194 : vector<16x256xi1>, vector<16x256xf32>
    %cst_62 = arith.constant 0.000000e+00 : f32
    %196 = vector.broadcast %cst_62 : f32 to vector<16x1xf32>
    %197 = vector.extract_strided_slice %157 {offsets = [0, 0], sizes = [16, 255], strides = [1, 1]} : vector<16x256xf32> to vector<16x255xf32>
    %198 = tpu.concatenate %196, %197 in 1 : vector<16x1xf32>, vector<16x255xf32> -> vector<16x256xf32>
    %c0_i32_63 = arith.constant 0 : i32
    %199 = vector.broadcast %c0_i32_63 : i32 to vector<1x256xi32>
    %200 = arith.cmpi sgt, %174, %199 : vector<1x256xi32>
    %cst_64 = arith.constant 0.000000e+00 : f32
    %201 = vector.shape_cast %200 : vector<1x256xi1> to vector<1x256xi1>
    %202 = vector.broadcast %201 : vector<1x256xi1> to vector<16x256xi1>
    %203 = vector.broadcast %cst_64 : f32 to vector<16x256xf32>
    %204 = arith.select %202, %198, %203 : vector<16x256xi1>, vector<16x256xf32>
    %205 = vector.extract_strided_slice %157 {offsets = [0, 1], sizes = [16, 255], strides = [1, 1]} : vector<16x256xf32> to vector<16x255xf32>
    %cst_65 = arith.constant 0.000000e+00 : f32
    %206 = vector.broadcast %cst_65 : f32 to vector<16x1xf32>
    %207 = tpu.concatenate %205, %206 in 1 : vector<16x255xf32>, vector<16x1xf32> -> vector<16x256xf32>
    %c15_i32_66 = arith.constant 15 : i32
    %208 = vector.broadcast %c15_i32_66 : i32 to vector<1x256xi32>
    %209 = arith.cmpi slt, %174, %208 : vector<1x256xi32>
    %cst_67 = arith.constant 0.000000e+00 : f32
    %210 = vector.shape_cast %209 : vector<1x256xi1> to vector<1x256xi1>
    %211 = vector.broadcast %210 : vector<1x256xi1> to vector<16x256xi1>
    %212 = vector.broadcast %cst_67 : f32 to vector<16x256xf32>
    %213 = arith.select %211, %207, %212 : vector<16x256xi1>, vector<16x256xf32>
    %214 = vector.extract_strided_slice %157 {offsets = [0, 15], sizes = [16, 241], strides = [1, 1]} : vector<16x256xf32> to vector<16x241xf32>
    %cst_68 = arith.constant 0.000000e+00 : f32
    %215 = vector.broadcast %cst_68 : f32 to vector<16x15xf32>
    %216 = tpu.concatenate %214, %215 in 1 : vector<16x241xf32>, vector<16x15xf32> -> vector<16x256xf32>
    %c0_i32_69 = arith.constant 0 : i32
    %217 = vector.broadcast %c0_i32_69 : i32 to vector<1x256xi32>
    %218 = arith.cmpi sgt, %174, %217 : vector<1x256xi32>
    %cst_70 = arith.constant 0.000000e+00 : f32
    %219 = vector.shape_cast %218 : vector<1x256xi1> to vector<1x256xi1>
    %220 = vector.broadcast %219 : vector<1x256xi1> to vector<16x256xi1>
    %221 = vector.broadcast %cst_70 : f32 to vector<16x256xf32>
    %222 = arith.select %220, %216, %221 : vector<16x256xi1>, vector<16x256xf32>
    %223 = vector.extract_strided_slice %157 {offsets = [0, 16], sizes = [16, 240], strides = [1, 1]} : vector<16x256xf32> to vector<16x240xf32>
    %cst_71 = arith.constant 0.000000e+00 : f32
    %224 = vector.broadcast %cst_71 : f32 to vector<16x16xf32>
    %225 = tpu.concatenate %223, %224 in 1 : vector<16x240xf32>, vector<16x16xf32> -> vector<16x256xf32>
    %226 = vector.extract_strided_slice %157 {offsets = [0, 17], sizes = [16, 239], strides = [1, 1]} : vector<16x256xf32> to vector<16x239xf32>
    %cst_72 = arith.constant 0.000000e+00 : f32
    %227 = vector.broadcast %cst_72 : f32 to vector<16x17xf32>
    %228 = tpu.concatenate %226, %227 in 1 : vector<16x239xf32>, vector<16x17xf32> -> vector<16x256xf32>
    %c15_i32_73 = arith.constant 15 : i32
    %229 = vector.broadcast %c15_i32_73 : i32 to vector<1x256xi32>
    %230 = arith.cmpi slt, %174, %229 : vector<1x256xi32>
    %cst_74 = arith.constant 0.000000e+00 : f32
    %231 = vector.shape_cast %230 : vector<1x256xi1> to vector<1x256xi1>
    %232 = vector.broadcast %231 : vector<1x256xi1> to vector<16x256xi1>
    %233 = vector.broadcast %cst_74 : f32 to vector<16x256xf32>
    %234 = arith.select %232, %228, %233 : vector<16x256xi1>, vector<16x256xf32>
    %235 = tpu.concatenate %183, %186, %195, %204, %157, %213, %222, %225, %234 in 0 : vector<16x256xf32>, vector<16x256xf32>, vector<16x256xf32>, vector<16x256xf32>, vector<16x256xf32>, vector<16x256xf32>, vector<16x256xf32>, vector<16x256xf32>, vector<16x256xf32> -> vector<144x256xf32>
    %cst_75 = arith.constant dense<0.000000e+00> : vector<32x256xf32>
    %236 = tpu.matmul %35, %235, %cst_75 {dimension_numbers = #tpu.dot_dimension_numbers<[1], [0], [0], [1], [0, 0, 1, 1], [], []>} : vector<32x144xf32>, vector<144x256xf32>, vector<32x256xf32> -> vector<32x256xf32>
    %237 = vector.broadcast %36 : vector<32x1xf32> to vector<32x256xf32>
    %238 = arith.addf %236, %237 : vector<32x256xf32>
    %cst_76 = arith.constant 0.000000e+00 : f32
    %239 = vector.broadcast %cst_76 : f32 to vector<32x256xf32>
    %240 = arith.maximumf %238, %239 : vector<32x256xf32>
    %c1 = arith.constant 1 : index
    %c0_77 = arith.constant 0 : index
    %c0_78 = arith.constant 0 : index
    %241 = vector.load %arg8[%c1, %c0_77, %c0_78] : memref<2x32x256xf32, #tpu.memory_space<vmem>>, vector<1x32x256xf32>
    %242 = vector.shape_cast %241 : vector<1x32x256xf32> to vector<32x256xf32>
    %243 = vector.shape_cast %240 : vector<32x256xf32> to vector<1x32x256xf32>
    tpu.vector_store %arg8[%c1, %c0_77, %c0_78], %243 {strides = array<i32>} : memref<2x32x256xf32, #tpu.memory_space<vmem>>, vector<1x32x256xf32>,
    %cst_79 = arith.constant dense<0.000000e+00> : vector<32xf32>
    %244 = vector.multi_reduction <add>, %240, %cst_79 [1] : vector<32x256xf32> to vector<32xf32>
    %245 = vector.shape_cast %244 : vector<32xf32> to vector<32x1xf32>
    %246 = arith.mulf %240, %240 : vector<32x256xf32>
    %cst_80 = arith.constant dense<0.000000e+00> : vector<32xf32>
    %247 = vector.multi_reduction <add>, %246, %cst_80 [1] : vector<32x256xf32> to vector<32xf32>
    %248 = vector.shape_cast %247 : vector<32xf32> to vector<32x1xf32>
    %249 = vector.extract_strided_slice %245 {offsets = [0, 0], sizes = [8, 1], strides = [1, 1]} : vector<32x1xf32> to vector<8x1xf32>
    %250 = arith.addf %149, %249 : vector<8x1xf32>
    %251 = vector.extract_strided_slice %248 {offsets = [0, 0], sizes = [8, 1], strides = [1, 1]} : vector<32x1xf32> to vector<8x1xf32>
    %252 = arith.addf %151, %251 : vector<8x1xf32>
    %253 = vector.extract_strided_slice %245 {offsets = [8, 0], sizes = [8, 1], strides = [1, 1]} : vector<32x1xf32> to vector<8x1xf32>
    %254 = arith.addf %250, %253 : vector<8x1xf32>
    %255 = vector.extract_strided_slice %248 {offsets = [8, 0], sizes = [8, 1], strides = [1, 1]} : vector<32x1xf32> to vector<8x1xf32>
    %256 = arith.addf %252, %255 : vector<8x1xf32>
    %257 = vector.extract_strided_slice %245 {offsets = [16, 0], sizes = [8, 1], strides = [1, 1]} : vector<32x1xf32> to vector<8x1xf32>
    %258 = arith.addf %254, %257 : vector<8x1xf32>
    %259 = vector.extract_strided_slice %248 {offsets = [16, 0], sizes = [8, 1], strides = [1, 1]} : vector<32x1xf32> to vector<8x1xf32>
    %260 = arith.addf %256, %259 : vector<8x1xf32>
    %261 = vector.extract_strided_slice %245 {offsets = [24, 0], sizes = [8, 1], strides = [1, 1]} : vector<32x1xf32> to vector<8x1xf32>
    %262 = arith.addf %258, %261 : vector<8x1xf32>
    %263 = vector.extract_strided_slice %248 {offsets = [24, 0], sizes = [8, 1], strides = [1, 1]} : vector<32x1xf32> to vector<8x1xf32>
    %264 = arith.addf %260, %263 : vector<8x1xf32>
    %cst_81 = arith.constant 2.048000e+03 : f32
    %265 = vector.broadcast %cst_81 : f32 to vector<8x1xf32>
    %266 = arith.divf %262, %265 : vector<8x1xf32>
    %cst_82 = arith.constant 2.048000e+03 : f32
    %267 = vector.broadcast %cst_82 : f32 to vector<8x1xf32>
    %268 = arith.divf %264, %267 : vector<8x1xf32>
    %269 = arith.mulf %266, %266 : vector<8x1xf32>
    %270 = arith.subf %268, %269 : vector<8x1xf32>
    %c0_83 = arith.constant 0 : index
    %c0_84 = arith.constant 0 : index
    %271 = vector.load %arg6[%c0_83, %c0_84] : memref<8x1xf32, #tpu.memory_space<vmem>>, vector<8x1xf32>
    %cst_85 = arith.constant 9.99999974E-6 : f32
    %272 = vector.broadcast %cst_85 : f32 to vector<8x1xf32>
    %273 = arith.addf %270, %272 : vector<8x1xf32>
    %274 = math.rsqrt %273 : vector<8x1xf32>
    %275 = arith.mulf %271, %274 : vector<8x1xf32>
    %c0_86 = arith.constant 0 : index
    %c0_87 = arith.constant 0 : index
    %276 = vector.load %arg9[%c0_86, %c0_87] : memref<8x1xf32, #tpu.memory_space<vmem>>, vector<8x1xf32>
    tpu.vector_store %arg9[%c0_86, %c0_87], %275 {strides = array<i32>} : memref<8x1xf32, #tpu.memory_space<vmem>>, vector<8x1xf32>,
    %c0_88 = arith.constant 0 : index
    %c0_89 = arith.constant 0 : index
    %277 = vector.load %arg7[%c0_88, %c0_89] : memref<8x1xf32, #tpu.memory_space<vmem>>, vector<8x1xf32>
    %278 = arith.mulf %266, %275 : vector<8x1xf32>
    %279 = arith.subf %277, %278 : vector<8x1xf32>
    %c0_90 = arith.constant 0 : index
    %c0_91 = arith.constant 0 : index
    %280 = vector.load %arg10[%c0_90, %c0_91] : memref<8x1xf32, #tpu.memory_space<vmem>>, vector<8x1xf32>
    tpu.vector_store %arg10[%c0_90, %c0_91], %279 {strides = array<i32>} : memref<8x1xf32, #tpu.memory_space<vmem>>, vector<8x1xf32>,
    return
  }
  func.func @transform_0(%arg0: i32) -> (i32, i32, i32) {
    %c0_i32 = arith.constant 0 : i32
    %c0_i32_0 = arith.constant 0 : i32
    %c0_i32_1 = arith.constant 0 : i32
    %c0_i32_2 = arith.constant 0 : i32
    return %c0_i32, %c0_i32_0, %c0_i32_1 : i32, i32, i32
  }
  func.func @transform_1(%arg0: i32) -> (i32, i32) {
    %c0_i32 = arith.constant 0 : i32
    %c0_i32_0 = arith.constant 0 : i32
    %c0_i32_1 = arith.constant 0 : i32
    return %c0_i32, %c0_i32_0 : i32, i32
  }
  func.func @transform_2(%arg0: i32) -> (i32, i32) {
    %c0_i32 = arith.constant 0 : i32
    %c0_i32_0 = arith.constant 0 : i32
    %c0_i32_1 = arith.constant 0 : i32
    return %c0_i32, %c0_i32_0 : i32, i32
  }
  func.func @transform_3(%arg0: i32) -> (i32, i32) {
    %c0_i32 = arith.constant 0 : i32
    %c0_i32_0 = arith.constant 0 : i32
    %c0_i32_1 = arith.constant 0 : i32
    return %c0_i32, %c0_i32_0 : i32, i32
  }
  func.func @transform_4(%arg0: i32) -> (i32, i32) {
    %c0_i32 = arith.constant 0 : i32
    %c0_i32_0 = arith.constant 0 : i32
    %c0_i32_1 = arith.constant 0 : i32
    return %c0_i32, %c0_i32_0 : i32, i32
  }
  func.func @transform_5(%arg0: i32) -> (i32, i32) {
    %c0_i32 = arith.constant 0 : i32
    %c0_i32_0 = arith.constant 0 : i32
    %c0_i32_1 = arith.constant 0 : i32
    return %c0_i32, %c0_i32_0 : i32, i32
  }
  func.func @transform_6(%arg0: i32) -> (i32, i32) {
    %c0_i32 = arith.constant 0 : i32
    %c0_i32_0 = arith.constant 0 : i32
    %c0_i32_1 = arith.constant 0 : i32
    return %c0_i32, %c0_i32_0 : i32, i32
  }
  func.func @transform_7(%arg0: i32) -> (i32, i32, i32) {
    %c0_i32 = arith.constant 0 : i32
    %c0_i32_0 = arith.constant 0 : i32
    %c0_i32_1 = arith.constant 0 : i32
    %c0_i32_2 = arith.constant 0 : i32
    return %c0_i32, %c0_i32_0, %c0_i32_1 : i32, i32, i32
  }
  func.func @transform_8(%arg0: i32) -> (i32, i32) {
    %c0_i32 = arith.constant 0 : i32
    %c0_i32_0 = arith.constant 0 : i32
    %c0_i32_1 = arith.constant 0 : i32
    return %c0_i32, %c0_i32_0 : i32, i32
  }
  func.func @transform_9(%arg0: i32) -> (i32, i32) {
    %c0_i32 = arith.constant 0 : i32
    %c0_i32_0 = arith.constant 0 : i32
    %c0_i32_1 = arith.constant 0 : i32
    return %c0_i32, %c0_i32_0 : i32, i32
  }
}

module attributes {stable_mosaic.version = 11 : i64} {
  func.func @kernel(%arg0: i32, %arg1: memref<1x8x1024xf32, #tpu.memory_space<vmem>>, %arg2: memref<8x1xf32, #tpu.memory_space<vmem>>, %arg3: memref<8x1xf32, #tpu.memory_space<vmem>>, %arg4: memref<8x72xf32, #tpu.memory_space<vmem>>, %arg5: memref<8x1xf32, #tpu.memory_space<vmem>>, %arg6: memref<1x8x1024xf32, #tpu.memory_space<vmem>>) attributes {dimension_semantics = [#tpu.dimension_semantics<parallel>], iteration_bounds = array<i64: 2>, scalar_prefetch = 0 : i64, scratch_operands = 0 : i64, tpu.core_type = #tpu.core_type<tc>, window_params = [{transform_indices = @transform_0, window_bounds = array<i64: 1, 8, 1024>}, {pipeline_mode = #tpu.pipeline_mode<synchronous>, transform_indices = @transform_1, window_bounds = array<i64: 8, 1>}, {pipeline_mode = #tpu.pipeline_mode<synchronous>, transform_indices = @transform_2, window_bounds = array<i64: 8, 1>}, {pipeline_mode = #tpu.pipeline_mode<synchronous>, transform_indices = @transform_3, window_bounds = array<i64: 8, 72>}, {pipeline_mode = #tpu.pipeline_mode<synchronous>, transform_indices = @transform_4, window_bounds = array<i64: 8, 1>}, {transform_indices = @transform_5, window_bounds = array<i64: 1, 8, 1024>}]} {
    %c0 = arith.constant 0 : index
    %c0_0 = arith.constant 0 : index
    %c0_1 = arith.constant 0 : index
    %0 = vector.load %arg1[%c0, %c0_0, %c0_1] : memref<1x8x1024xf32, #tpu.memory_space<vmem>>, vector<1x8x1024xf32>
    %1 = vector.shape_cast %0 : vector<1x8x1024xf32> to vector<8x1024xf32>
    %c0_2 = arith.constant 0 : index
    %c0_3 = arith.constant 0 : index
    %2 = vector.load %arg2[%c0_2, %c0_3] : memref<8x1xf32, #tpu.memory_space<vmem>>, vector<8x1xf32>
    %3 = vector.broadcast %2 : vector<8x1xf32> to vector<8x1024xf32>
    %4 = arith.mulf %1, %3 : vector<8x1024xf32>
    %c0_4 = arith.constant 0 : index
    %c0_5 = arith.constant 0 : index
    %5 = vector.load %arg3[%c0_4, %c0_5] : memref<8x1xf32, #tpu.memory_space<vmem>>, vector<8x1xf32>
    %6 = vector.broadcast %5 : vector<8x1xf32> to vector<8x1024xf32>
    %7 = arith.addf %4, %6 : vector<8x1024xf32>
    %8 = tpu.iota {dimensions = array<i32: 1>} : vector<1x1024xi32>
    %c32_i32 = arith.constant 32 : i32
    %c0_i32 = arith.constant 0 : i32
    %9 = arith.cmpi eq, %c32_i32, %c0_i32 : i32
    %c1_i32 = arith.constant 1 : i32
    %10 = arith.select %9, %c1_i32, %c32_i32 : i32
    %11 = vector.broadcast %10 : i32 to vector<1x1024xi32>
    %12 = arith.remsi %8, %11 : vector<1x1024xi32>
    %c0_i32_6 = arith.constant 0 : i32
    %13 = vector.broadcast %c0_i32_6 : i32 to vector<1x1024xi32>
    %14 = arith.cmpi ne, %12, %13 : vector<1x1024xi32>
    %c0_i32_7 = arith.constant 0 : i32
    %15 = vector.broadcast %c0_i32_7 : i32 to vector<1x1024xi32>
    %16 = arith.cmpi slt, %12, %15 : vector<1x1024xi32>
    %c0_i32_8 = arith.constant 0 : i32
    %17 = arith.cmpi slt, %10, %c0_i32_8 : i32
    %18 = vector.broadcast %17 : i1 to vector<1x1024xi1>
    %19 = vector.broadcast %18 : vector<1x1024xi1> to vector<1x1024xi1>
    %20 = arith.xori %16, %19 : vector<1x1024xi1>
    %21 = arith.andi %20, %14 : vector<1x1024xi1>
    %22 = vector.broadcast %10 : i32 to vector<1x1024xi32>
    %23 = arith.addi %12, %22 : vector<1x1024xi32>
    %24 = arith.select %21, %23, %12 : vector<1x1024xi1>, vector<1x1024xi32>
    %cst = arith.constant 0.000000e+00 : f32
    %25 = vector.broadcast %cst : f32 to vector<8x33xf32>
    %26 = vector.extract_strided_slice %7 {offsets = [0, 0], sizes = [8, 991], strides = [1, 1]} : vector<8x1024xf32> to vector<8x991xf32>
    %27 = tpu.concatenate %25, %26 in 1 : vector<8x33xf32>, vector<8x991xf32> -> vector<8x1024xf32>
    %c0_i32_9 = arith.constant 0 : i32
    %28 = vector.broadcast %c0_i32_9 : i32 to vector<1x1024xi32>
    %29 = arith.cmpi sgt, %24, %28 : vector<1x1024xi32>
    %cst_10 = arith.constant 0.000000e+00 : f32
    %30 = vector.shape_cast %29 : vector<1x1024xi1> to vector<1x1024xi1>
    %31 = vector.broadcast %30 : vector<1x1024xi1> to vector<8x1024xi1>
    %32 = vector.broadcast %cst_10 : f32 to vector<8x1024xf32>
    %33 = arith.select %31, %27, %32 : vector<8x1024xi1>, vector<8x1024xf32>
    %cst_11 = arith.constant 0.000000e+00 : f32
    %34 = vector.broadcast %cst_11 : f32 to vector<8x32xf32>
    %35 = vector.extract_strided_slice %7 {offsets = [0, 0], sizes = [8, 992], strides = [1, 1]} : vector<8x1024xf32> to vector<8x992xf32>
    %36 = tpu.concatenate %34, %35 in 1 : vector<8x32xf32>, vector<8x992xf32> -> vector<8x1024xf32>
    %cst_12 = arith.constant 0.000000e+00 : f32
    %37 = vector.broadcast %cst_12 : f32 to vector<8x31xf32>
    %38 = vector.extract_strided_slice %7 {offsets = [0, 0], sizes = [8, 993], strides = [1, 1]} : vector<8x1024xf32> to vector<8x993xf32>
    %39 = tpu.concatenate %37, %38 in 1 : vector<8x31xf32>, vector<8x993xf32> -> vector<8x1024xf32>
    %c31_i32 = arith.constant 31 : i32
    %40 = vector.broadcast %c31_i32 : i32 to vector<1x1024xi32>
    %41 = arith.cmpi slt, %24, %40 : vector<1x1024xi32>
    %cst_13 = arith.constant 0.000000e+00 : f32
    %42 = vector.shape_cast %41 : vector<1x1024xi1> to vector<1x1024xi1>
    %43 = vector.broadcast %42 : vector<1x1024xi1> to vector<8x1024xi1>
    %44 = vector.broadcast %cst_13 : f32 to vector<8x1024xf32>
    %45 = arith.select %43, %39, %44 : vector<8x1024xi1>, vector<8x1024xf32>
    %cst_14 = arith.constant 0.000000e+00 : f32
    %46 = vector.broadcast %cst_14 : f32 to vector<8x1xf32>
    %47 = vector.extract_strided_slice %7 {offsets = [0, 0], sizes = [8, 1023], strides = [1, 1]} : vector<8x1024xf32> to vector<8x1023xf32>
    %48 = tpu.concatenate %46, %47 in 1 : vector<8x1xf32>, vector<8x1023xf32> -> vector<8x1024xf32>
    %c0_i32_15 = arith.constant 0 : i32
    %49 = vector.broadcast %c0_i32_15 : i32 to vector<1x1024xi32>
    %50 = arith.cmpi sgt, %24, %49 : vector<1x1024xi32>
    %cst_16 = arith.constant 0.000000e+00 : f32
    %51 = vector.shape_cast %50 : vector<1x1024xi1> to vector<1x1024xi1>
    %52 = vector.broadcast %51 : vector<1x1024xi1> to vector<8x1024xi1>
    %53 = vector.broadcast %cst_16 : f32 to vector<8x1024xf32>
    %54 = arith.select %52, %48, %53 : vector<8x1024xi1>, vector<8x1024xf32>
    %55 = vector.extract_strided_slice %7 {offsets = [0, 1], sizes = [8, 1023], strides = [1, 1]} : vector<8x1024xf32> to vector<8x1023xf32>
    %cst_17 = arith.constant 0.000000e+00 : f32
    %56 = vector.broadcast %cst_17 : f32 to vector<8x1xf32>
    %57 = tpu.concatenate %55, %56 in 1 : vector<8x1023xf32>, vector<8x1xf32> -> vector<8x1024xf32>
    %c31_i32_18 = arith.constant 31 : i32
    %58 = vector.broadcast %c31_i32_18 : i32 to vector<1x1024xi32>
    %59 = arith.cmpi slt, %24, %58 : vector<1x1024xi32>
    %cst_19 = arith.constant 0.000000e+00 : f32
    %60 = vector.shape_cast %59 : vector<1x1024xi1> to vector<1x1024xi1>
    %61 = vector.broadcast %60 : vector<1x1024xi1> to vector<8x1024xi1>
    %62 = vector.broadcast %cst_19 : f32 to vector<8x1024xf32>
    %63 = arith.select %61, %57, %62 : vector<8x1024xi1>, vector<8x1024xf32>
    %64 = vector.extract_strided_slice %7 {offsets = [0, 31], sizes = [8, 993], strides = [1, 1]} : vector<8x1024xf32> to vector<8x993xf32>
    %cst_20 = arith.constant 0.000000e+00 : f32
    %65 = vector.broadcast %cst_20 : f32 to vector<8x31xf32>
    %66 = tpu.concatenate %64, %65 in 1 : vector<8x993xf32>, vector<8x31xf32> -> vector<8x1024xf32>
    %c0_i32_21 = arith.constant 0 : i32
    %67 = vector.broadcast %c0_i32_21 : i32 to vector<1x1024xi32>
    %68 = arith.cmpi sgt, %24, %67 : vector<1x1024xi32>
    %cst_22 = arith.constant 0.000000e+00 : f32
    %69 = vector.shape_cast %68 : vector<1x1024xi1> to vector<1x1024xi1>
    %70 = vector.broadcast %69 : vector<1x1024xi1> to vector<8x1024xi1>
    %71 = vector.broadcast %cst_22 : f32 to vector<8x1024xf32>
    %72 = arith.select %70, %66, %71 : vector<8x1024xi1>, vector<8x1024xf32>
    %73 = vector.extract_strided_slice %7 {offsets = [0, 32], sizes = [8, 992], strides = [1, 1]} : vector<8x1024xf32> to vector<8x992xf32>
    %cst_23 = arith.constant 0.000000e+00 : f32
    %74 = vector.broadcast %cst_23 : f32 to vector<8x32xf32>
    %75 = tpu.concatenate %73, %74 in 1 : vector<8x992xf32>, vector<8x32xf32> -> vector<8x1024xf32>
    %76 = vector.extract_strided_slice %7 {offsets = [0, 33], sizes = [8, 991], strides = [1, 1]} : vector<8x1024xf32> to vector<8x991xf32>
    %cst_24 = arith.constant 0.000000e+00 : f32
    %77 = vector.broadcast %cst_24 : f32 to vector<8x33xf32>
    %78 = tpu.concatenate %76, %77 in 1 : vector<8x991xf32>, vector<8x33xf32> -> vector<8x1024xf32>
    %c31_i32_25 = arith.constant 31 : i32
    %79 = vector.broadcast %c31_i32_25 : i32 to vector<1x1024xi32>
    %80 = arith.cmpi slt, %24, %79 : vector<1x1024xi32>
    %cst_26 = arith.constant 0.000000e+00 : f32
    %81 = vector.shape_cast %80 : vector<1x1024xi1> to vector<1x1024xi1>
    %82 = vector.broadcast %81 : vector<1x1024xi1> to vector<8x1024xi1>
    %83 = vector.broadcast %cst_26 : f32 to vector<8x1024xf32>
    %84 = arith.select %82, %78, %83 : vector<8x1024xi1>, vector<8x1024xf32>
    %85 = tpu.concatenate %33, %36, %45, %54, %7, %63, %72, %75, %84 in 0 : vector<8x1024xf32>, vector<8x1024xf32>, vector<8x1024xf32>, vector<8x1024xf32>, vector<8x1024xf32>, vector<8x1024xf32>, vector<8x1024xf32>, vector<8x1024xf32>, vector<8x1024xf32> -> vector<72x1024xf32>
    %c0_27 = arith.constant 0 : index
    %c0_28 = arith.constant 0 : index
    %86 = vector.load %arg4[%c0_27, %c0_28] : memref<8x72xf32, #tpu.memory_space<vmem>>, vector<8x72xf32>
    %cst_29 = arith.constant dense<0.000000e+00> : vector<8x1024xf32>
    %87 = tpu.matmul %86, %85, %cst_29 {dimension_numbers = #tpu.dot_dimension_numbers<[1], [0], [0], [1], [0, 0, 1, 1], [], []>} : vector<8x72xf32>, vector<72x1024xf32>, vector<8x1024xf32> -> vector<8x1024xf32>
    %c0_30 = arith.constant 0 : index
    %c0_31 = arith.constant 0 : index
    %88 = vector.load %arg5[%c0_30, %c0_31] : memref<8x1xf32, #tpu.memory_space<vmem>>, vector<8x1xf32>
    %89 = vector.broadcast %88 : vector<8x1xf32> to vector<8x1024xf32>
    %90 = arith.addf %87, %89 : vector<8x1024xf32>
    %cst_32 = arith.constant 0.000000e+00 : f32
    %91 = vector.broadcast %cst_32 : f32 to vector<8x1024xf32>
    %92 = arith.maximumf %90, %91 : vector<8x1024xf32>
    %93 = arith.negf %92 : vector<8x1024xf32>
    %94 = math.exp %93 : vector<8x1024xf32>
    %cst_33 = arith.constant 1.000000e+00 : f32
    %95 = vector.broadcast %cst_33 : f32 to vector<8x1024xf32>
    %96 = arith.addf %95, %94 : vector<8x1024xf32>
    %97 = arith.divf %95, %96 : vector<8x1024xf32>
    %c0_34 = arith.constant 0 : index
    %c0_35 = arith.constant 0 : index
    %c0_36 = arith.constant 0 : index
    %98 = vector.load %arg6[%c0_34, %c0_35, %c0_36] : memref<1x8x1024xf32, #tpu.memory_space<vmem>>, vector<1x8x1024xf32>
    %99 = vector.shape_cast %98 : vector<1x8x1024xf32> to vector<8x1024xf32>
    %100 = vector.shape_cast %97 : vector<8x1024xf32> to vector<1x8x1024xf32>
    tpu.vector_store %arg6[%c0_34, %c0_35, %c0_36], %100 {strides = array<i32>} : memref<1x8x1024xf32, #tpu.memory_space<vmem>>, vector<1x8x1024xf32>,
    return
  }
  func.func @transform_0(%arg0: i32) -> (i32, i32, i32) {
    %c0_i32 = arith.constant 0 : i32
    %c0_i32_0 = arith.constant 0 : i32
    %c0_i32_1 = arith.constant 0 : i32
    return %arg0, %c0_i32, %c0_i32_0 : i32, i32, i32
  }
  func.func @transform_1(%arg0: i32) -> (i32, i32) {
    %c0_i32 = arith.constant 0 : i32
    %c0_i32_0 = arith.constant 0 : i32
    %c0_i32_1 = arith.constant 0 : i32
    return %c0_i32, %c0_i32_0 : i32, i32
  }
  func.func @transform_2(%arg0: i32) -> (i32, i32) {
    %c0_i32 = arith.constant 0 : i32
    %c0_i32_0 = arith.constant 0 : i32
    %c0_i32_1 = arith.constant 0 : i32
    return %c0_i32, %c0_i32_0 : i32, i32
  }
  func.func @transform_3(%arg0: i32) -> (i32, i32) {
    %c0_i32 = arith.constant 0 : i32
    %c0_i32_0 = arith.constant 0 : i32
    %c0_i32_1 = arith.constant 0 : i32
    return %c0_i32, %c0_i32_0 : i32, i32
  }
  func.func @transform_4(%arg0: i32) -> (i32, i32) {
    %c0_i32 = arith.constant 0 : i32
    %c0_i32_0 = arith.constant 0 : i32
    %c0_i32_1 = arith.constant 0 : i32
    return %c0_i32, %c0_i32_0 : i32, i32
  }
  func.func @transform_5(%arg0: i32) -> (i32, i32, i32) {
    %c0_i32 = arith.constant 0 : i32
    %c0_i32_0 = arith.constant 0 : i32
    %c0_i32_1 = arith.constant 0 : i32
    return %arg0, %c0_i32, %c0_i32_0 : i32, i32, i32
  }
}

</mosaic_0001>

<llo_original>
// kernel: upsample_conv_forward.3
$region0: #{upsample_conv_forward.3}
  #allocation0 [shape = 'u32[]', space=smem, size = 0x4, offset = 0x4, fixed_abs, tag = 'smem constant byte address 0x4 - core index']
  #allocation1 [shape = 'u32[144,128]{1,0:T(1,128)}', space=vmem, size = 0x12000, scoped, tag = 'internal scratch']
  %s0 = inlined_call_operand.vmem [shape: f32[2,8,1024], index: 0, kind: input, shape index: {}]
  %s1 = inlined_call_operand.vmem [shape: f32[8,1], index: 1, kind: input, shape index: {}]
  %s2 = inlined_call_operand.vmem [shape: f32[8,1], index: 2, kind: input, shape index: {}]
  %s3 = inlined_call_operand.vmem [shape: f32[8,72], index: 3, kind: input, shape index: {}]
  %s4 = inlined_call_operand.vmem [shape: f32[8,1], index: 4, kind: input, shape index: {}]
  %s5 = inlined_call_operand.vmem [shape: f32[2,8,1024], index: 5, kind: output, shape index: {}]
  %s6 = sld [smem:[#allocation0]]
  $region53: #{upsample_conv_forward.3} parent=0
    _
  %s8 = ssub.s32 1, %s6
  %s9 = scalar_select 0, %s8, %s6
  loop: start=0, step=1, limit=4
  $region2: #{upsample_conv_forward.3} parent=0 // loop_pre_header
    _
  $region3: #{upsample_conv_forward.3} parent=0 // loop_header
    %s11 = sphi 0, %s15
    %p12 = scmp.ge.s32.totalorder %s11, 4
    %s21 = sphi 0, %s23
    %s24 = sphi 0, %s21
    %s25 = sphi 0, %s24
    %s41 = sphi 0, %s25
    %s45 = sphi 0, %s45
    %s47 = sphi 0, %s45
    %s48 = sphi 0, %s47
    %s62 = sphi 0, %s48
    %s66 = sphi 0, %s66
    %s68 = sphi 0, %s66
    %s69 = sphi 0, %s68
    %s83 = sphi 0, %s69
    %s87 = sphi 0, %s87
    %s89 = sphi 0, %s87
    %s90 = sphi 0, %s89
    %s104 = sphi 0, %s90
    %s108 = sphi 0, %s108
    %s110 = sphi 0, %s108
    %s111 = sphi 0, %s110
    %s125 = sphi 0, %s111
    %s131 = sphi 0, %s133
    %s134 = sphi 0, %s131
    %s135 = sphi 0, %s134
    %s151 = sphi 0, %s135
  $region4: #{upsample_conv_forward.3} parent=0 // loop_header_branch
    %14 = sbr.rel (%p12) target = $region8
  $region5: #{upsample_conv_forward.3} parent=0 // loop_body
    %s16 = ssub.s32 %s11, 1
    %s17 = ssub.s32 %s11, 2
    %s18 = sadd.s32 %s11, 1
    %s19 = ssub.s32 %s11, %s18
    %p20 = scmp.eq.s32.totalorder %s19, 0
    %s22 = sadd.s32 %s21, 1
    %s23 = scalar_select %p20, %s21, %s22
    %p26 = pneg %p20
    %p27 = scmp.eq.s32.totalorder %s11, 1
    %p28 = por %p26, %p27
    %p29 = scmp.ne.s32.totalorder %s21, %s24
    %p30 = scmp.eq.s32.totalorder %s11, 0
    %p31 = por %p29, %p30
    %p32 = scmp.ne.s32.totalorder %s21, %s24
    %p33 = scmp.eq.s32.totalorder %s16, 1
    %p34 = por %p32, %p33
    %p35 = scmp.ne.s32.totalorder %s24, %s25
    %p36 = scmp.eq.s32.totalorder %s16, 0
    %p37 = por %p35, %p36
    %p38 = scmp.ne.s32.totalorder %s24, %s25
    %p39 = scmp.eq.s32.totalorder %s17, 1
    %p40 = por %p38, %p39
    %p42 = scmp.ne.s32.totalorder %s25, %s41
    %p43 = scmp.eq.s32.totalorder %s17, 0
    %p44 = por %p42, %p43
    %s46 = sadd.s32 %s45, 1
    %p49 = scmp.eq.s32.totalorder %s11, 1
    %p50 = scmp.ne.s32.totalorder %s45, %s47
    %p51 = scmp.eq.s32.totalorder %s11, 0
    %p52 = por %p50, %p51
    %p53 = scmp.ne.s32.totalorder %s45, %s47
    %p54 = scmp.eq.s32.totalorder %s16, 1
    %p55 = por %p53, %p54
    %p56 = scmp.ne.s32.totalorder %s47, %s48
    %p57 = scmp.eq.s32.totalorder %s16, 0
    %p58 = por %p56, %p57
    %p59 = scmp.ne.s32.totalorder %s47, %s48
    %p60 = scmp.eq.s32.totalorder %s17, 1
    %p61 = por %p59, %p60
    %p63 = scmp.ne.s32.totalorder %s48, %s62
    %p64 = scmp.eq.s32.totalorder %s17, 0
    %p65 = por %p63, %p64
    %s67 = sadd.s32 %s66, 1
    %p70 = scmp.eq.s32.totalorder %s11, 1
    %p71 = scmp.ne.s32.totalorder %s66, %s68
    %p72 = scmp.eq.s32.totalorder %s11, 0
    %p73 = por %p71, %p72
    %p74 = scmp.ne.s32.totalorder %s66, %s68
    %p75 = scmp.eq.s32.totalorder %s16, 1
    %p76 = por %p74, %p75
    %p77 = scmp.ne.s32.totalorder %s68, %s69
    %p78 = scmp.eq.s32.totalorder %s16, 0
    %p79 = por %p77, %p78
    %p80 = scmp.ne.s32.totalorder %s68, %s69
    %p81 = scmp.eq.s32.totalorder %s17, 1
    %p82 = por %p80, %p81
    %p84 = scmp.ne.s32.totalorder %s69, %s83
    %p85 = scmp.eq.s32.totalorder %s17, 0
    %p86 = por %p84, %p85
    %s88 = sadd.s32 %s87, 1
    %p91 = scmp.eq.s32.totalorder %s11, 1
    %p92 = scmp.ne.s32.totalorder %s87, %s89
    %p93 = scmp.eq.s32.totalorder %s11, 0
    %p94 = por %p92, %p93
    %p95 = scmp.ne.s32.totalorder %s87, %s89
    %p96 = scmp.eq.s32.totalorder %s16, 1
    %p97 = por %p95, %p96
    %p98 = scmp.ne.s32.totalorder %s89, %s90
    %p99 = scmp.eq.s32.totalorder %s16, 0
    %p100 = por %p98, %p99
    %p101 = scmp.ne.s32.totalorder %s89, %s90
    %p102 = scmp.eq.s32.totalorder %s17, 1
    %p103 = por %p101, %p102
    %p105 = scmp.ne.s32.totalorder %s90, %s104
    %p106 = scmp.eq.s32.totalorder %s17, 0
    %p107 = por %p105, %p106
    %s109 = sadd.s32 %s108, 1
    %p112 = scmp.eq.s32.totalorder %s11, 1
    %p113 = scmp.ne.s32.totalorder %s108, %s110
    %p114 = scmp.eq.s32.totalorder %s11, 0
    %p115 = por %p113, %p114
    %p116 = scmp.ne.s32.totalorder %s108, %s110
    %p117 = scmp.eq.s32.totalorder %s16, 1
    %p118 = por %p116, %p117
    %p119 = scmp.ne.s32.totalorder %s110, %s111
    %p120 = scmp.eq.s32.totalorder %s16, 0
    %p121 = por %p119, %p120
    %p122 = scmp.ne.s32.totalorder %s110, %s111
    %p123 = scmp.eq.s32.totalorder %s17, 1
    %p124 = por %p122, %p123
    %p126 = scmp.ne.s32.totalorder %s111, %s125
    %p127 = scmp.eq.s32.totalorder %s17, 0
    %p128 = por %p126, %p127
    %s129 = ssub.s32 %s11, %s18
    %p130 = scmp.eq.s32.totalorder %s129, 0
    %s132 = sadd.s32 %s131, 1
    %s133 = scalar_select %p130, %s131, %s132
    %p136 = pneg %p130
    %p137 = scmp.eq.s32.totalorder %s11, 1
    %p138 = por %p136, %p137
    %p139 = scmp.ne.s32.totalorder %s131, %s134
    %p140 = scmp.eq.s32.totalorder %s11, 0
    %p141 = por %p139, %p140
    %p142 = scmp.ne.s32.totalorder %s131, %s134
    %p143 = scmp.eq.s32.totalorder %s16, 1
    %p144 = por %p142, %p143
    %p145 = scmp.ne.s32.totalorder %s134, %s135
    %p146 = scmp.eq.s32.totalorder %s16, 0
    %p147 = por %p145, %p146
    %p148 = scmp.ne.s32.totalorder %s134, %s135
    %p149 = scmp.eq.s32.totalorder %s17, 1
    %p150 = por %p148, %p149
    %p152 = scmp.ne.s32.totalorder %s135, %s151
    %p153 = scmp.eq.s32.totalorder %s17, 0
    %p154 = por %p152, %p153
    %p155 = scmp.le.s32.totalorder 1, %s11
    %p156 = scmp.lt.s32.totalorder %s11, 3
    %p157 = pnand %p155, %p156
    %p158 = pneg %p157
    // Predicated region
    $region9: #{upsample_conv_forward.3} parent=5 // pred_check
      _
    $region10: #{upsample_conv_forward.3} parent=5 // pred_check_branch
      %160 = sbr.rel (%p157) target = $region12
    $region11: #{upsample_conv_forward.3} parent=5 // pred_region
      %s161 = ssub.s32 %s11, 1
      // Predicated region
      $region13: #{upsample_conv_forward.3} parent=11 // pred_check
        %p162 = pneg %p58
      $region14: #{upsample_conv_forward.3} parent=11 // pred_check_branch
        %164 = sbr.rel (%p162) target = $region16
      $region15: #{upsample_conv_forward.3} parent=11 // pred_region
        _
      $region16: #{upsample_conv_forward.3} parent=11 // pred_fallthru
        _
      // Predicated region
      $region17: #{upsample_conv_forward.3} parent=11 // pred_check
        %p165 = pneg %p79
      $region18: #{upsample_conv_forward.3} parent=11 // pred_check_branch
        %167 = sbr.rel (%p165) target = $region20
      $region19: #{upsample_conv_forward.3} parent=11 // pred_region
        _
      $region20: #{upsample_conv_forward.3} parent=11 // pred_fallthru
        _
      // Predicated region
      $region21: #{upsample_conv_forward.3} parent=11 // pred_check
        %p168 = pneg %p100
      $region22: #{upsample_conv_forward.3} parent=11 // pred_check_branch
        %170 = sbr.rel (%p168) target = $region24
      $region23: #{upsample_conv_forward.3} parent=11 // pred_region
        _
      $region24: #{upsample_conv_forward.3} parent=11 // pred_fallthru
        _
      // Predicated region
      $region25: #{upsample_conv_forward.3} parent=11 // pred_check
        %p171 = pneg %p121
      $region26: #{upsample_conv_forward.3} parent=11 // pred_check_branch
        %173 = sbr.rel (%p171) target = $region28
      $region27: #{upsample_conv_forward.3} parent=11 // pred_region
        _
      $region28: #{upsample_conv_forward.3} parent=11 // pred_fallthru
        _
    $region12: #{upsample_conv_forward.3} parent=5 // pred_fallthru
      _
    %p174 = scmp.lt.s32.totalorder %s11, 2
    // Predicated region
    $region29: #{upsample_conv_forward.3} parent=5 // pred_check
      %p175 = pneg %p174
    $region30: #{upsample_conv_forward.3} parent=5 // pred_check_branch
      %177 = sbr.rel (%p175) target = $region32
    $region31: #{upsample_conv_forward.3} parent=5 // pred_region
      // Predicated region
      $region33: #{upsample_conv_forward.3} parent=31 // pred_check
        %p178 = pneg %p31
      $region34: #{upsample_conv_forward.3} parent=31 // pred_check_branch
        %180 = sbr.rel (%p178) target = $region36
      $region35: #{upsample_conv_forward.3} parent=31 // pred_region
        %p181 = scmp.lt.s32.totalorder %s11, 1
        %s182 = scalar_select %p181, %s11, 1
        %s183 = smul.addr %s182, 8
        %s184 = smul.addr %s183, 8
        %s185 = scalar_lea.vmem %s0, %s184
      $region36: #{upsample_conv_forward.3} parent=31 // pred_fallthru
        _
    $region32: #{upsample_conv_forward.3} parent=5 // pred_fallthru
      _
    %p186 = scmp.le.s32.totalorder 1, %s11
    %p187 = scmp.lt.s32.totalorder %s11, 3
    %p188 = pnand %p186, %p187
    %p189 = pneg %p188
    // Predicated region
    $region37: #{upsample_conv_forward.3} parent=5 // pred_check
      _
    $region38: #{upsample_conv_forward.3} parent=5 // pred_check_branch
      %191 = sbr.rel (%p188) target = $region40
    $region39: #{upsample_conv_forward.3} parent=5 // pred_region
      %s192 = ssub.s32 %s11, 1
      %p193 = scmp.lt.s32.totalorder %s16, 1
      %s194 = scalar_select %p193, %s16, 1
      %s195 = smul.addr %s194, 8
      %s196 = smul.addr %s195, 8
      %s197 = scalar_lea.vmem %s0, %s196
      %p198 = pneg %p37
      %p199 = pneg %p34
      %p200 = pneg %p58
      %p201 = pneg %p55
      %p202 = pneg %p79
      %p203 = pneg %p76
      %p204 = pneg %p100
      %p205 = pneg %p97
      %p206 = pneg %p121
      %p207 = pneg %p118
      %p208 = pneg %p147
      %p209 = pneg %p144
      %p210 = scmp.lt.s32.totalorder %s16, 1
      %s211 = scalar_select %p210, %s16, 1
      %s212 = smul.addr %s211, 8
      %s213 = smul.addr %s212, 8
      %s214 = scalar_lea.vmem %s5, %s213
      %p215 = scmp.lt.s32.totalorder %s16, 1
      %s216 = scalar_select %p215, %s16, 1
      %s217 = smul.addr %s216, 8
      %s218 = smul.addr %s217, 8
      %s219 = scalar_lea.vmem %s0, %s218
      %p220 = scmp.lt.s32.totalorder %s16, 1
      %s221 = scalar_select %p220, %s16, 1
      %s222 = smul.addr %s221, 8
      %s223 = smul.addr %s222, 8
      %s224 = scalar_lea.vmem %s5, %s223
      %v225 = vld [vmem:[%s219] sm:$0xff]
      %v226 = vld [vmem:[%s219 + $0x8] sm:$0xff]
      %v227 = vld [vmem:[%s219 + $0x10] sm:$0xff]
      %v228 = vld [vmem:[%s219 + $0x18] sm:$0xff]
      %v229 = vld [vmem:[%s219 + $0x20] sm:$0xff]
      %v230 = vld [vmem:[%s219 + $0x28] sm:$0xff]
      %v231 = vld [vmem:[%s219 + $0x30] sm:$0xff]
      %v232 = vld [vmem:[%s219 + $0x38] sm:$0xff]
      %v233 = vld [vmem:[%s1] sm:$0xff]
      %235 = vset.pattern.permute.xlu0 0
      %236 = vperm.xlu0 %235, %v233
      %v237 = vpop.permute.xlu0 %236
      %v239 = vmul.f32 %v225, %v237
      %v240 = vmul.f32 %v226, %v237
      %v241 = vmul.f32 %v227, %v237
      %v242 = vmul.f32 %v228, %v237
      %v243 = vmul.f32 %v229, %v237
      %v244 = vmul.f32 %v230, %v237
      %v245 = vmul.f32 %v231, %v237
      %v246 = vmul.f32 %v232, %v237
      %v247 = vld [vmem:[%s2] sm:$0xff]
      %249 = vset.pattern.permute.xlu0 0
      %250 = vperm.xlu0 %249, %v247
      %v251 = vpop.permute.xlu0 %250
      %v253 = vadd.f32 %v239, %v251
      %v254 = vadd.f32 %v240, %v251
      %v255 = vadd.f32 %v241, %v251
      %v256 = vadd.f32 %v242, %v251
      %v257 = vadd.f32 %v243, %v251
      %v258 = vadd.f32 %v244, %v251
      %v259 = vadd.f32 %v245, %v251
      %v260 = vadd.f32 %v246, %v251
      %v261 = vlaneseq
      %v262 = vand.u32 %v261, 127
      %v263 = vadd.s32 %v262, 128
      %v264 = vadd.s32 %v262, 256
      %v265 = vadd.s32 %v262, 384
      %v266 = vadd.s32 %v262, 512
      %v267 = vadd.s32 %v262, 640
      %v268 = vadd.s32 %v262, 768
      %v269 = vadd.s32 %v262, 896
      %vm270 = vcmp.lt.s32.totalorder %v262, 0
      %v271 = vsub.s32 0, %v262
      %v272 = vsel %vm270, %v271, %v262
      %v273 = vshrl.u32 %v272, 5
      %v274 = vand.u32 %v272, 31
      %v275 = vsub.s32 0, %v274
      %v276 = vsel %vm270, %v275, %v274
      %vm277 = vcmp.lt.s32.totalorder %v263, 0
      %v278 = vsub.s32 0, %v263
      %v279 = vsel %vm277, %v278, %v263
      %v280 = vshrl.u32 %v279, 5
      %v281 = vand.u32 %v279, 31
      %v282 = vsub.s32 0, %v281
      %v283 = vsel %vm277, %v282, %v281
      %vm284 = vcmp.lt.s32.totalorder %v264, 0
      %v285 = vsub.s32 0, %v264
      %v286 = vsel %vm284, %v285, %v264
      %v287 = vshrl.u32 %v286, 5
      %v288 = vand.u32 %v286, 31
      %v289 = vsub.s32 0, %v288
      %v290 = vsel %vm284, %v289, %v288
      %vm291 = vcmp.lt.s32.totalorder %v265, 0
      %v292 = vsub.s32 0, %v265
      %v293 = vsel %vm291, %v292, %v265
      %v294 = vshrl.u32 %v293, 5
      %v295 = vand.u32 %v293, 31
      %v296 = vsub.s32 0, %v295
      %v297 = vsel %vm291, %v296, %v295
      %vm298 = vcmp.lt.s32.totalorder %v266, 0
      %v299 = vsub.s32 0, %v266
      %v300 = vsel %vm298, %v299, %v266
      %v301 = vshrl.u32 %v300, 5
      %v302 = vand.u32 %v300, 31
      %v303 = vsub.s32 0, %v302
      %v304 = vsel %vm298, %v303, %v302
      %vm305 = vcmp.lt.s32.totalorder %v267, 0
      %v306 = vsub.s32 0, %v267
      %v307 = vsel %vm305, %v306, %v267
      %v308 = vshrl.u32 %v307, 5
      %v309 = vand.u32 %v307, 31
      %v310 = vsub.s32 0, %v309
      %v311 = vsel %vm305, %v310, %v309
      %vm312 = vcmp.lt.s32.totalorder %v268, 0
      %v313 = vsub.s32 0, %v268
      %v314 = vsel %vm312, %v313, %v268
      %v315 = vshrl.u32 %v314, 5
      %v316 = vand.u32 %v314, 31
      %v317 = vsub.s32 0, %v316
      %v318 = vsel %vm312, %v317, %v316
      %vm319 = vcmp.lt.s32.totalorder %v269, 0
      %v320 = vsub.s32 0, %v269
      %v321 = vsel %vm319, %v320, %v269
      %v322 = vshrl.u32 %v321, 5
      %v323 = vand.u32 %v321, 31
      %v324 = vsub.s32 0, %v323
      %v325 = vsel %vm319, %v324, %v323
      %vm326 = vcmp.ne.s32.totalorder %v276, 0
      %vm327 = vcmp.ne.s32.totalorder %v283, 0
      %vm328 = vcmp.ne.s32.totalorder %v290, 0
      %vm329 = vcmp.ne.s32.totalorder %v297, 0
      %vm330 = vcmp.ne.s32.totalorder %v304, 0
      %vm331 = vcmp.ne.s32.totalorder %v311, 0
      %vm332 = vcmp.ne.s32.totalorder %v318, 0
      %vm333 = vcmp.ne.s32.totalorder %v325, 0
      %vm334 = vcmp.lt.s32.totalorder %v276, 0
      %vm335 = vcmp.lt.s32.totalorder %v283, 0
      %vm336 = vcmp.lt.s32.totalorder %v290, 0
      %vm337 = vcmp.lt.s32.totalorder %v297, 0
      %vm338 = vcmp.lt.s32.totalorder %v304, 0
      %vm339 = vcmp.lt.s32.totalorder %v311, 0
      %vm340 = vcmp.lt.s32.totalorder %v318, 0
      %vm341 = vcmp.lt.s32.totalorder %v325, 0
      %vm342 = vmand %vm334, %vm326
      %vm343 = vmand %vm335, %vm327
      %vm344 = vmand %vm336, %vm328
      %vm345 = vmand %vm337, %vm329
      %vm346 = vmand %vm338, %vm330
      %vm347 = vmand %vm339, %vm331
      %vm348 = vmand %vm340, %vm332
      %vm349 = vmand %vm341, %vm333
      %v350 = vadd.s32 %v276, 32
      %v351 = vadd.s32 %v283, 32
      %v352 = vadd.s32 %v290, 32
      %v353 = vadd.s32 %v297, 32
      %v354 = vadd.s32 %v304, 32
      %v355 = vadd.s32 %v311, 32
      %v356 = vadd.s32 %v318, 32
      %v357 = vadd.s32 %v325, 32
      %v358 = vsel %vm342, %v350, %v276
      %v359 = vsel %vm343, %v351, %v283
      %v360 = vsel %vm344, %v352, %v290
      %v361 = vsel %vm345, %v353, %v297
      %v362 = vsel %vm346, %v354, %v304
      %v363 = vsel %vm347, %v355, %v311
      %v364 = vsel %vm348, %v356, %v318
      %v365 = vsel %vm349, %v357, %v325
      %374 = vrot.lane.b32.xlu0 %v253, 33
      %v375 = vpop.permute.xlu0 %374
      %376 = vrot.lane.b32.xlu0 %v254, 33
      %v377 = vpop.permute.xlu0 %376
      %378 = vrot.lane.b32.xlu0 %v255, 33
      %v379 = vpop.permute.xlu0 %378
      %380 = vrot.lane.b32.xlu0 %v256, 33
      %v381 = vpop.permute.xlu0 %380
      %382 = vrot.lane.b32.xlu0 %v257, 33
      %v383 = vpop.permute.xlu0 %382
      %384 = vrot.lane.b32.xlu0 %v258, 33
      %v385 = vpop.permute.xlu0 %384
      %386 = vrot.lane.b32.xlu0 %v259, 33
      %v387 = vpop.permute.xlu0 %386
      %388 = vrot.lane.b32.xlu0 %v260, 33
      %v389 = vpop.permute.xlu0 %388
      %vm390 = vcmask 269312
      %v391 = vsel %vm390, %v375, %v377
      %v392 = vsel %vm390, %v377, %v379
      %v393 = vsel %vm390, %v379, %v381
      %v394 = vsel %vm390, %v381, %v383
      %v395 = vsel %vm390, %v383, %v385
      %v396 = vsel %vm390, %v385, %v387
      %v397 = vsel %vm390, %v387, %v389
      %v406 = vsel %vm390, 0.0, %v375
      %vm407 = vcmp.gt.s32.totalorder %v358, 0
      %vm408 = vcmp.gt.s32.totalorder %v359, 0
      %vm409 = vcmp.gt.s32.totalorder %v360, 0
      %vm410 = vcmp.gt.s32.totalorder %v361, 0
      %vm411 = vcmp.gt.s32.totalorder %v362, 0
      %vm412 = vcmp.gt.s32.totalorder %v363, 0
      %vm413 = vcmp.gt.s32.totalorder %v364, 0
      %vm414 = vcmp.gt.s32.totalorder %v365, 0
      %v415 = vsel %vm407, 1, 0
      %v416 = vsel %vm408, 1, 0
      %v417 = vsel %vm409, 1, 0
      %v418 = vsel %vm410, 1, 0
      %v419 = vsel %vm411, 1, 0
      %v420 = vsel %vm412, 1, 0
      %v421 = vsel %vm413, 1, 0
      %v422 = vsel %vm414, 1, 0
      %vm423 = vcmp.eq.s32.totalorder %v415, 1
      %vm424 = vcmp.eq.s32.totalorder %v416, 1
      %vm425 = vcmp.eq.s32.totalorder %v417, 1
      %vm426 = vcmp.eq.s32.totalorder %v418, 1
      %vm427 = vcmp.eq.s32.totalorder %v419, 1
      %vm428 = vcmp.eq.s32.totalorder %v420, 1
      %vm429 = vcmp.eq.s32.totalorder %v421, 1
      %vm430 = vcmp.eq.s32.totalorder %v422, 1
      %v431 = vsel %vm423, %v406, 0.0
      %v432 = vsel %vm424, %v391, 0.0
      %v433 = vsel %vm425, %v392, 0.0
      %v434 = vsel %vm426, %v393, 0.0
      %v435 = vsel %vm427, %v394, 0.0
      %v436 = vsel %vm428, %v395, 0.0
      %v437 = vsel %vm429, %v396, 0.0
      %v438 = vsel %vm430, %v397, 0.0
      %439 = vrot.lane.b32.xlu0 %v253, 32
      %v440 = vpop.permute.xlu0 %439
      %441 = vrot.lane.b32.xlu0 %v254, 32
      %v442 = vpop.permute.xlu0 %441
      %443 = vrot.lane.b32.xlu0 %v255, 32
      %v444 = vpop.permute.xlu0 %443
      %445 = vrot.lane.b32.xlu0 %v256, 32
      %v446 = vpop.permute.xlu0 %445
      %447 = vrot.lane.b32.xlu0 %v257, 32
      %v448 = vpop.permute.xlu0 %447
      %449 = vrot.lane.b32.xlu0 %v258, 32
      %v450 = vpop.permute.xlu0 %449
      %451 = vrot.lane.b32.xlu0 %v259, 32
      %v452 = vpop.permute.xlu0 %451
      %453 = vrot.lane.b32.xlu0 %v260, 32
      %v454 = vpop.permute.xlu0 %453
      %vm455 = vcmask 261120
      %v456 = vsel %vm455, %v440, %v442
      %v457 = vsel %vm455, %v442, %v444
      %v458 = vsel %vm455, %v444, %v446
      %v459 = vsel %vm455, %v446, %v448
      %v460 = vsel %vm455, %v448, %v450
      %v461 = vsel %vm455, %v450, %v452
      %v462 = vsel %vm455, %v452, %v454
      %v471 = vsel %vm455, 0.0, %v440
      %472 = vrot.lane.b32.xlu0 %v253, 31
      %v473 = vpop.permute.xlu0 %472
      %474 = vrot.lane.b32.xlu0 %v254, 31
      %v475 = vpop.permute.xlu0 %474
      %476 = vrot.lane.b32.xlu0 %v255, 31
      %v477 = vpop.permute.xlu0 %476
      %478 = vrot.lane.b32.xlu0 %v256, 31
      %v479 = vpop.permute.xlu0 %478
      %480 = vrot.lane.b32.xlu0 %v257, 31
      %v481 = vpop.permute.xlu0 %480
      %482 = vrot.lane.b32.xlu0 %v258, 31
      %v483 = vpop.permute.xlu0 %482
      %484 = vrot.lane.b32.xlu0 %v259, 31
      %v485 = vpop.permute.xlu0 %484
      %486 = vrot.lane.b32.xlu0 %v260, 31
      %v487 = vpop.permute.xlu0 %486
      %vm488 = vcmask 252928
      %v489 = vsel %vm488, %v473, %v475
      %v490 = vsel %vm488, %v475, %v477
      %v491 = vsel %vm488, %v477, %v479
      %v492 = vsel %vm488, %v479, %v481
      %v493 = vsel %vm488, %v481, %v483
      %v494 = vsel %vm488, %v483, %v485
      %v495 = vsel %vm488, %v485, %v487
      %v504 = vsel %vm488, 0.0, %v473
      %vm505 = vcmp.lt.s32.totalorder %v358, 31
      %vm506 = vcmp.lt.s32.totalorder %v359, 31
      %vm507 = vcmp.lt.s32.totalorder %v360, 31
      %vm508 = vcmp.lt.s32.totalorder %v361, 31
      %vm509 = vcmp.lt.s32.totalorder %v362, 31
      %vm510 = vcmp.lt.s32.totalorder %v363, 31
      %vm511 = vcmp.lt.s32.totalorder %v364, 31
      %vm512 = vcmp.lt.s32.totalorder %v365, 31
      %v513 = vsel %vm505, 1, 0
      %v514 = vsel %vm506, 1, 0
      %v515 = vsel %vm507, 1, 0
      %v516 = vsel %vm508, 1, 0
      %v517 = vsel %vm509, 1, 0
      %v518 = vsel %vm510, 1, 0
      %v519 = vsel %vm511, 1, 0
      %v520 = vsel %vm512, 1, 0
      %vm521 = vcmp.eq.s32.totalorder %v513, 1
      %vm522 = vcmp.eq.s32.totalorder %v514, 1
      %vm523 = vcmp.eq.s32.totalorder %v515, 1
      %vm524 = vcmp.eq.s32.totalorder %v516, 1
      %vm525 = vcmp.eq.s32.totalorder %v517, 1
      %vm526 = vcmp.eq.s32.totalorder %v518, 1
      %vm527 = vcmp.eq.s32.totalorder %v519, 1
      %vm528 = vcmp.eq.s32.totalorder %v520, 1
      %v529 = vsel %vm521, %v504, 0.0
      %v530 = vsel %vm522, %v489, 0.0
      %v531 = vsel %vm523, %v490, 0.0
      %v532 = vsel %vm524, %v491, 0.0
      %v533 = vsel %vm525, %v492, 0.0
      %v534 = vsel %vm526, %v493, 0.0
      %v535 = vsel %vm527, %v494, 0.0
      %v536 = vsel %vm528, %v495, 0.0
      %537 = vrot.lane.b32.xlu0 %v253, 1
      %v538 = vpop.permute.xlu0 %537
      %539 = vrot.lane.b32.xlu0 %v254, 1
      %v540 = vpop.permute.xlu0 %539
      %541 = vrot.lane.b32.xlu0 %v255, 1
      %v542 = vpop.permute.xlu0 %541
      %543 = vrot.lane.b32.xlu0 %v256, 1
      %v544 = vpop.permute.xlu0 %543
      %545 = vrot.lane.b32.xlu0 %v257, 1
      %v546 = vpop.permute.xlu0 %545
      %547 = vrot.lane.b32.xlu0 %v258, 1
      %v548 = vpop.permute.xlu0 %547
      %549 = vrot.lane.b32.xlu0 %v259, 1
      %v550 = vpop.permute.xlu0 %549
      %551 = vrot.lane.b32.xlu0 %v260, 1
      %v552 = vpop.permute.xlu0 %551
      %vm553 = vcmask 7168
      %v554 = vsel %vm553, %v538, %v540
      %v555 = vsel %vm553, %v540, %v542
      %v556 = vsel %vm553, %v542, %v544
      %v557 = vsel %vm553, %v544, %v546
      %v558 = vsel %vm553, %v546, %v548
      %v559 = vsel %vm553, %v548, %v550
      %v560 = vsel %vm553, %v550, %v552
      %v569 = vsel %vm553, 0.0, %v538
      %v570 = vsel %vm423, %v569, 0.0
      %v571 = vsel %vm424, %v554, 0.0
      %v572 = vsel %vm425, %v555, 0.0
      %v573 = vsel %vm426, %v556, 0.0
      %v574 = vsel %vm427, %v557, 0.0
      %v575 = vsel %vm428, %v558, 0.0
      %v576 = vsel %vm429, %v559, 0.0
      %v577 = vsel %vm430, %v560, 0.0
      %578 = vrot.lane.b32.xlu0 %v253, 127
      %v579 = vpop.permute.xlu0 %578
      %580 = vrot.lane.b32.xlu0 %v254, 127
      %v581 = vpop.permute.xlu0 %580
      %582 = vrot.lane.b32.xlu0 %v255, 127
      %v583 = vpop.permute.xlu0 %582
      %584 = vrot.lane.b32.xlu0 %v256, 127
      %v585 = vpop.permute.xlu0 %584
      %586 = vrot.lane.b32.xlu0 %v257, 127
      %v587 = vpop.permute.xlu0 %586
      %588 = vrot.lane.b32.xlu0 %v258, 127
      %v589 = vpop.permute.xlu0 %588
      %590 = vrot.lane.b32.xlu0 %v259, 127
      %v591 = vpop.permute.xlu0 %590
      %592 = vrot.lane.b32.xlu0 %v260, 127
      %v593 = vpop.permute.xlu0 %592
      %vm594 = vcmask 1039360
      %v595 = vsel %vm594, %v579, %v581
      %v596 = vsel %vm594, %v581, %v583
      %v597 = vsel %vm594, %v583, %v585
      %v598 = vsel %vm594, %v585, %v587
      %v599 = vsel %vm594, %v587, %v589
      %v600 = vsel %vm594, %v589, %v591
      %v601 = vsel %vm594, %v591, %v593
      %v610 = vsel %vm594, %v593, 0.0
      %v611 = vsel %vm521, %v595, 0.0
      %v612 = vsel %vm522, %v596, 0.0
      %v613 = vsel %vm523, %v597, 0.0
      %v614 = vsel %vm524, %v598, 0.0
      %v615 = vsel %vm525, %v599, 0.0
      %v616 = vsel %vm526, %v600, 0.0
      %v617 = vsel %vm527, %v601, 0.0
      %v618 = vsel %vm528, %v610, 0.0
      %619 = vrot.lane.b32.xlu0 %v253, 97
      %v620 = vpop.permute.xlu0 %619
      %621 = vrot.lane.b32.xlu0 %v254, 97
      %v622 = vpop.permute.xlu0 %621
      %623 = vrot.lane.b32.xlu0 %v255, 97
      %v624 = vpop.permute.xlu0 %623
      %625 = vrot.lane.b32.xlu0 %v256, 97
      %v626 = vpop.permute.xlu0 %625
      %627 = vrot.lane.b32.xlu0 %v257, 97
      %v628 = vpop.permute.xlu0 %627
      %629 = vrot.lane.b32.xlu0 %v258, 97
      %v630 = vpop.permute.xlu0 %629
      %631 = vrot.lane.b32.xlu0 %v259, 97
      %v632 = vpop.permute.xlu0 %631
      %633 = vrot.lane.b32.xlu0 %v260, 97
      %v634 = vpop.permute.xlu0 %633
      %vm635 = vcmask 793600
      %v636 = vsel %vm635, %v620, %v622
      %v637 = vsel %vm635, %v622, %v624
      %v638 = vsel %vm635, %v624, %v626
      %v639 = vsel %vm635, %v626, %v628
      %v640 = vsel %vm635, %v628, %v630
      %v641 = vsel %vm635, %v630, %v632
      %v642 = vsel %vm635, %v632, %v634
      %v651 = vsel %vm635, %v634, 0.0
      %v652 = vsel %vm423, %v636, 0.0
      %v653 = vsel %vm424, %v637, 0.0
      %v654 = vsel %vm425, %v638, 0.0
      %v655 = vsel %vm426, %v639, 0.0
      %v656 = vsel %vm427, %v640, 0.0
      %v657 = vsel %vm428, %v641, 0.0
      %v658 = vsel %vm429, %v642, 0.0
      %v659 = vsel %vm430, %v651, 0.0
      %660 = vrot.lane.b32.xlu0 %v253, 96
      %v661 = vpop.permute.xlu0 %660
      %662 = vrot.lane.b32.xlu0 %v254, 96
      %v663 = vpop.permute.xlu0 %662
      %664 = vrot.lane.b32.xlu0 %v255, 96
      %v665 = vpop.permute.xlu0 %664
      %666 = vrot.lane.b32.xlu0 %v256, 96
      %v667 = vpop.permute.xlu0 %666
      %668 = vrot.lane.b32.xlu0 %v257, 96
      %v669 = vpop.permute.xlu0 %668
      %670 = vrot.lane.b32.xlu0 %v258, 96
      %v671 = vpop.permute.xlu0 %670
      %672 = vrot.lane.b32.xlu0 %v259, 96
      %v673 = vpop.permute.xlu0 %672
      %674 = vrot.lane.b32.xlu0 %v260, 96
      %v675 = vpop.permute.xlu0 %674
      %vm676 = vcmask 785408
      %v677 = vsel %vm676, %v661, %v663
      %v678 = vsel %vm676, %v663, %v665
      %v679 = vsel %vm676, %v665, %v667
      %v680 = vsel %vm676, %v667, %v669
      %v681 = vsel %vm676, %v669, %v671
      %v682 = vsel %vm676, %v671, %v673
      %v683 = vsel %vm676, %v673, %v675
      %v692 = vsel %vm676, %v675, 0.0
      %693 = vrot.lane.b32.xlu0 %v253, 95
      %v694 = vpop.permute.xlu0 %693
      %695 = vrot.lane.b32.xlu0 %v254, 95
      %v696 = vpop.permute.xlu0 %695
      %697 = vrot.lane.b32.xlu0 %v255, 95
      %v698 = vpop.permute.xlu0 %697
      %699 = vrot.lane.b32.xlu0 %v256, 95
      %v700 = vpop.permute.xlu0 %699
      %701 = vrot.lane.b32.xlu0 %v257, 95
      %v702 = vpop.permute.xlu0 %701
      %703 = vrot.lane.b32.xlu0 %v258, 95
      %v704 = vpop.permute.xlu0 %703
      %705 = vrot.lane.b32.xlu0 %v259, 95
      %v706 = vpop.permute.xlu0 %705
      %707 = vrot.lane.b32.xlu0 %v260, 95
      %v708 = vpop.permute.xlu0 %707
      %vm709 = vcmask 777216
      %v710 = vsel %vm709, %v694, %v696
      %v711 = vsel %vm709, %v696, %v698
      %v712 = vsel %vm709, %v698, %v700
      %v713 = vsel %vm709, %v700, %v702
      %v714 = vsel %vm709, %v702, %v704
      %v715 = vsel %vm709, %v704, %v706
      %v716 = vsel %vm709, %v706, %v708
      %v725 = vsel %vm709, %v708, 0.0
      %v726 = vsel %vm521, %v710, 0.0
      %v727 = vsel %vm522, %v711, 0.0
      %v728 = vsel %vm523, %v712, 0.0
      %v729 = vsel %vm524, %v713, 0.0
      %v730 = vsel %vm525, %v714, 0.0
      %v731 = vsel %vm526, %v715, 0.0
      %v732 = vsel %vm527, %v716, 0.0
      %v733 = vsel %vm528, %v725, 0.0
      %v734 = vld [vmem:[%s3] sm:$0xff]
      %v735 = vld [vmem:[%s4] sm:$0xff]
      %737 = vset.pattern.permute.xlu0 0
      %738 = vperm.xlu0 %737, %v735
      %v739 = vpop.permute.xlu0 %738
      %vm741 = vcmask 588800
      %v743 = vsel %vm741, %v734, 0
      %745 = vmatprep.subr.mxu0 0.0
      %746 = vmatpush1.msra.mxu0 0.0
      %747 = vmatprep.subr.mxu0 0.0
      %748 = vmatpush1.msra.mxu0 0.0
      %749 = vmatprep.subr.mxu0 0.0
      %750 = vmatpush1.msra.mxu0 0.0
      %751 = vmatprep.subr.mxu0 0.0
      %752 = vmatpush1.msra.mxu0 0.0
      %753 = vmatprep.subr.mxu0 0.0
      %754 = vmatpush1.msra.mxu0 0.0
      %755 = vmatprep.subr.mxu0 0.0
      %756 = vmatpush1.msra.mxu0 0.0
      %757 = vmatprep.subr.mxu0 0.0
      %758 = vmatpush1.msra.mxu0 0.0
      %759 = vmatprep.subr.mxu0 %v727
      %760 = vmatpush1.msra.mxu0 %v726
      %761 = vmatprep.subr.mxu0 %v678
      %762 = vmatpush1.msra.mxu0 %v677
      %763 = vmatprep.subr.mxu0 %v653
      %764 = vmatpush1.msra.mxu0 %v652
      %765 = vmatprep.subr.mxu0 %v612
      %766 = vmatpush1.msra.mxu0 %v611
      %767 = vmatprep.subr.mxu0 %v254
      %768 = vmatpush1.msra.mxu0 %v253
      %769 = vmatprep.subr.mxu0 %v571
      %770 = vmatpush1.msra.mxu0 %v570
      %771 = vmatprep.subr.mxu0 %v530
      %772 = vmatpush1.msra.mxu0 %v529
      %773 = vmatprep.subr.mxu0 %v456
      %774 = vmatpush1.msra.mxu0 %v471
      %775 = vmatprep.subr.mxu0 %v432
      %776 = vmatpush1.msra.mxu0 %v431
      %777 = vmatprep.subr.mxu0 0.0
      %778 = vmatpush2.msra.mxu0 0.0
      %779 = vmatprep.subr.mxu0 0.0
      %780 = vmatpush2.msra.mxu0 0.0
      %781 = vmatprep.subr.mxu0 0.0
      %782 = vmatpush2.msra.mxu0 0.0
      %783 = vmatprep.subr.mxu0 0.0
      %784 = vmatpush2.msra.mxu0 0.0
      %785 = vmatprep.subr.mxu0 0.0
      %786 = vmatpush2.msra.mxu0 0.0
      %787 = vmatprep.subr.mxu0 0.0
      %788 = vmatpush2.msra.mxu0 0.0
      %789 = vmatprep.subr.mxu0 0.0
      %790 = vmatpush2.msra.mxu0 0.0
      %791 = vmatprep.subr.mxu0 0.0
      %792 = vmatpush2.msra.mxu0 0.0
      %793 = vmatprep.subr.mxu0 0.0
      %794 = vmatpush2.msra.mxu0 0.0
      %795 = vmatprep.subr.mxu0 0.0
      %796 = vmatpush2.msra.mxu0 0.0
      %797 = vmatprep.subr.mxu0 0.0
      %798 = vmatpush2.msra.mxu0 0.0
      %799 = vmatprep.subr.mxu0 0.0
      %800 = vmatpush2.msra.mxu0 0.0
      %801 = vmatprep.subr.mxu0 0.0
      %802 = vmatpush2.msra.mxu0 0.0
      %803 = vmatprep.subr.mxu0 0.0
      %804 = vmatpush2.msra.mxu0 0.0
      %805 = vmatprep.subr.mxu0 0.0
      %806 = vmatpush2.msra.mxu0 0.0
      %807 = vmatprep.subr.mxu0 0.0
      %808 = vmatpush2.msra.mxu0 0.0
      %809 = vmatprep.mubr.f32.mxu0 0.0
      %810 = vmatmul.mubr.f32.gmra.mxu0 %v743
      %v811 = vpop.f32.mrf.mxu0
      %v812 = vadd.f32 %v739, %v811
      %v813 = vpop.f32.mrf.mxu0
      %v814 = vadd.f32 %v739, %v813
      %815 = vdwg.mxu0
      %816 = vmatprep.subr.mxu0 0.0
      %817 = vmatpush1.msra.mxu0 0.0
      %818 = vmatprep.subr.mxu0 0.0
      %819 = vmatpush1.msra.mxu0 0.0
      %820 = vmatprep.subr.mxu0 0.0
      %821 = vmatpush1.msra.mxu0 0.0
      %822 = vmatprep.subr.mxu0 0.0
      %823 = vmatpush1.msra.mxu0 0.0
      %824 = vmatprep.subr.mxu0 0.0
      %825 = vmatpush1.msra.mxu0 0.0
      %826 = vmatprep.subr.mxu0 0.0
      %827 = vmatpush1.msra.mxu0 0.0
      %828 = vmatprep.subr.mxu0 0.0
      %829 = vmatpush1.msra.mxu0 0.0
      %830 = vmatprep.subr.mxu0 %v729
      %831 = vmatpush1.msra.mxu0 %v728
      %832 = vmatprep.subr.mxu0 %v680
      %833 = vmatpush1.msra.mxu0 %v679
      %834 = vmatprep.subr.mxu0 %v655
      %835 = vmatpush1.msra.mxu0 %v654
      %836 = vmatprep.subr.mxu0 %v614
      %837 = vmatpush1.msra.mxu0 %v613
      %838 = vmatprep.subr.mxu0 %v256
      %839 = vmatpush1.msra.mxu0 %v255
      %840 = vmatprep.subr.mxu0 %v573
      %841 = vmatpush1.msra.mxu0 %v572
      %842 = vmatprep.subr.mxu0 %v532
      %843 = vmatpush1.msra.mxu0 %v531
      %844 = vmatprep.subr.mxu0 %v458
      %845 = vmatpush1.msra.mxu0 %v457
      %846 = vmatprep.subr.mxu0 %v434
      %847 = vmatpush1.msra.mxu0 %v433
      %848 = vmatprep.subr.mxu0 0.0
      %849 = vmatpush2.msra.mxu0 0.0
      %850 = vmatprep.subr.mxu0 0.0
      %851 = vmatpush2.msra.mxu0 0.0
      %852 = vmatprep.subr.mxu0 0.0
      %853 = vmatpush2.msra.mxu0 0.0
      %854 = vmatprep.subr.mxu0 0.0
      %855 = vmatpush2.msra.mxu0 0.0
      %856 = vmatprep.subr.mxu0 0.0
      %857 = vmatpush2.msra.mxu0 0.0
      %858 = vmatprep.subr.mxu0 0.0
      %859 = vmatpush2.msra.mxu0 0.0
      %860 = vmatprep.subr.mxu0 0.0
      %861 = vmatpush2.msra.mxu0 0.0
      %862 = vmatprep.subr.mxu0 0.0
      %863 = vmatpush2.msra.mxu0 0.0
      %864 = vmatprep.subr.mxu0 0.0
      %865 = vmatpush2.msra.mxu0 0.0
      %866 = vmatprep.subr.mxu0 0.0
      %867 = vmatpush2.msra.mxu0 0.0
      %868 = vmatprep.subr.mxu0 0.0
      %869 = vmatpush2.msra.mxu0 0.0
      %870 = vmatprep.subr.mxu0 0.0
      %871 = vmatpush2.msra.mxu0 0.0
      %872 = vmatprep.subr.mxu0 0.0
      %873 = vmatpush2.msra.mxu0 0.0
      %874 = vmatprep.subr.mxu0 0.0
      %875 = vmatpush2.msra.mxu0 0.0
      %876 = vmatprep.subr.mxu0 0.0
      %877 = vmatpush2.msra.mxu0 0.0
      %878 = vmatprep.subr.mxu0 0.0
      %879 = vmatpush2.msra.mxu0 0.0
      %880 = vmatprep.mubr.f32.mxu0 0.0
      %881 = vmatmul.mubr.f32.gmra.mxu0 %v743
      %v882 = vpop.f32.mrf.mxu0
      %v883 = vadd.f32 %v739, %v882
      %v884 = vpop.f32.mrf.mxu0
      %v885 = vadd.f32 %v739, %v884
      %886 = vdwg.mxu0
      %887 = vmatprep.subr.mxu0 0.0
      %888 = vmatpush1.msra.mxu0 0.0
      %889 = vmatprep.subr.mxu0 0.0
      %890 = vmatpush1.msra.mxu0 0.0
      %891 = vmatprep.subr.mxu0 0.0
      %892 = vmatpush1.msra.mxu0 0.0
      %893 = vmatprep.subr.mxu0 0.0
      %894 = vmatpush1.msra.mxu0 0.0
      %895 = vmatprep.subr.mxu0 0.0
      %896 = vmatpush1.msra.mxu0 0.0
      %897 = vmatprep.subr.mxu0 0.0
      %898 = vmatpush1.msra.mxu0 0.0
      %899 = vmatprep.subr.mxu0 0.0
      %900 = vmatpush1.msra.mxu0 0.0
      %901 = vmatprep.subr.mxu0 %v731
      %902 = vmatpush1.msra.mxu0 %v730
      %903 = vmatprep.subr.mxu0 %v682
      %904 = vmatpush1.msra.mxu0 %v681
      %905 = vmatprep.subr.mxu0 %v657
      %906 = vmatpush1.msra.mxu0 %v656
      %907 = vmatprep.subr.mxu0 %v616
      %908 = vmatpush1.msra.mxu0 %v615
      %909 = vmatprep.subr.mxu0 %v258
      %910 = vmatpush1.msra.mxu0 %v257
      %911 = vmatprep.subr.mxu0 %v575
      %912 = vmatpush1.msra.mxu0 %v574
      %913 = vmatprep.subr.mxu0 %v534
      %914 = vmatpush1.msra.mxu0 %v533
      %915 = vmatprep.subr.mxu0 %v460
      %916 = vmatpush1.msra.mxu0 %v459
      %917 = vmatprep.subr.mxu0 %v436
      %918 = vmatpush1.msra.mxu0 %v435
      %919 = vmatprep.subr.mxu0 0.0
      %920 = vmatpush2.msra.mxu0 0.0
      %921 = vmatprep.subr.mxu0 0.0
      %922 = vmatpush2.msra.mxu0 0.0
      %923 = vmatprep.subr.mxu0 0.0
      %924 = vmatpush2.msra.mxu0 0.0
      %925 = vmatprep.subr.mxu0 0.0
      %926 = vmatpush2.msra.mxu0 0.0
      %927 = vmatprep.subr.mxu0 0.0
      %928 = vmatpush2.msra.mxu0 0.0
      %929 = vmatprep.subr.mxu0 0.0
      %930 = vmatpush2.msra.mxu0 0.0
      %931 = vmatprep.subr.mxu0 0.0
      %932 = vmatpush2.msra.mxu0 0.0
      %933 = vmatprep.subr.mxu0 0.0
      %934 = vmatpush2.msra.mxu0 0.0
      %935 = vmatprep.subr.mxu0 0.0
      %936 = vmatpush2.msra.mxu0 0.0
      %937 = vmatprep.subr.mxu0 0.0
      %938 = vmatpush2.msra.mxu0 0.0
      %939 = vmatprep.subr.mxu0 0.0
      %940 = vmatpush2.msra.mxu0 0.0
      %941 = vmatprep.subr.mxu0 0.0
      %942 = vmatpush2.msra.mxu0 0.0
      %943 = vmatprep.subr.mxu0 0.0
      %944 = vmatpush2.msra.mxu0 0.0
      %945 = vmatprep.subr.mxu0 0.0
      %946 = vmatpush2.msra.mxu0 0.0
      %947 = vmatprep.subr.mxu0 0.0
      %948 = vmatpush2.msra.mxu0 0.0
      %949 = vmatprep.subr.mxu0 0.0
      %950 = vmatpush2.msra.mxu0 0.0
      %951 = vmatprep.mubr.f32.mxu0 0.0
      %952 = vmatmul.mubr.f32.gmra.mxu0 %v743
      %v953 = vpop.f32.mrf.mxu0
      %v954 = vadd.f32 %v739, %v953
      %v955 = vpop.f32.mrf.mxu0
      %v956 = vadd.f32 %v739, %v955
      %957 = vdwg.mxu0
      %958 = vmatprep.subr.mxu0 0.0
      %959 = vmatpush1.msra.mxu0 0.0
      %960 = vmatprep.subr.mxu0 0.0
      %961 = vmatpush1.msra.mxu0 0.0
      %962 = vmatprep.subr.mxu0 0.0
      %963 = vmatpush1.msra.mxu0 0.0
      %964 = vmatprep.subr.mxu0 0.0
      %965 = vmatpush1.msra.mxu0 0.0
      %966 = vmatprep.subr.mxu0 0.0
      %967 = vmatpush1.msra.mxu0 0.0
      %968 = vmatprep.subr.mxu0 0.0
      %969 = vmatpush1.msra.mxu0 0.0
      %970 = vmatprep.subr.mxu0 0.0
      %971 = vmatpush1.msra.mxu0 0.0
      %972 = vmatprep.subr.mxu0 %v733
      %973 = vmatpush1.msra.mxu0 %v732
      %974 = vmatprep.subr.mxu0 %v692
      %975 = vmatpush1.msra.mxu0 %v683
      %976 = vmatprep.subr.mxu0 %v659
      %977 = vmatpush1.msra.mxu0 %v658
      %978 = vmatprep.subr.mxu0 %v618
      %979 = vmatpush1.msra.mxu0 %v617
      %980 = vmatprep.subr.mxu0 %v260
      %981 = vmatpush1.msra.mxu0 %v259
      %982 = vmatprep.subr.mxu0 %v577
      %983 = vmatpush1.msra.mxu0 %v576
      %984 = vmatprep.subr.mxu0 %v536
      %985 = vmatpush1.msra.mxu0 %v535
      %986 = vmatprep.subr.mxu0 %v462
      %987 = vmatpush1.msra.mxu0 %v461
      %988 = vmatprep.subr.mxu0 %v438
      %989 = vmatpush1.msra.mxu0 %v437
      %990 = vmatprep.subr.mxu0 0.0
      %991 = vmatpush2.msra.mxu0 0.0
      %992 = vmatprep.subr.mxu0 0.0
      %993 = vmatpush2.msra.mxu0 0.0
      %994 = vmatprep.subr.mxu0 0.0
      %995 = vmatpush2.msra.mxu0 0.0
      %996 = vmatprep.subr.mxu0 0.0
      %997 = vmatpush2.msra.mxu0 0.0
      %998 = vmatprep.subr.mxu0 0.0
      %999 = vmatpush2.msra.mxu0 0.0
      %1000 = vmatprep.subr.mxu0 0.0
      %1001 = vmatpush2.msra.mxu0 0.0
      %1002 = vmatprep.subr.mxu0 0.0
      %1003 = vmatpush2.msra.mxu0 0.0
      %1004 = vmatprep.subr.mxu0 0.0
      %1005 = vmatpush2.msra.mxu0 0.0
      %1006 = vmatprep.subr.mxu0 0.0
      %1007 = vmatpush2.msra.mxu0 0.0
      %1008 = vmatprep.subr.mxu0 0.0
      %1009 = vmatpush2.msra.mxu0 0.0
      %1010 = vmatprep.subr.mxu0 0.0
      %1011 = vmatpush2.msra.mxu0 0.0
      %1012 = vmatprep.subr.mxu0 0.0
      %1013 = vmatpush2.msra.mxu0 0.0
      %1014 = vmatprep.subr.mxu0 0.0
      %1015 = vmatpush2.msra.mxu0 0.0
      %1016 = vmatprep.subr.mxu0 0.0
      %1017 = vmatpush2.msra.mxu0 0.0
      %1018 = vmatprep.subr.mxu0 0.0
      %1019 = vmatpush2.msra.mxu0 0.0
      %1020 = vmatprep.subr.mxu0 0.0
      %1021 = vmatpush2.msra.mxu0 0.0
      %1022 = vmatprep.mubr.f32.mxu0 0.0
      %1023 = vmatmul.mubr.f32.gmra.mxu0 %v743
      %v1024 = vpop.f32.mrf.mxu0
      %v1025 = vadd.f32 %v739, %v1024
      %v1026 = vpop.f32.mrf.mxu0
      %v1027 = vadd.f32 %v739, %v1026
      %1028 = vdwg.mxu0
      %v1029 = vmax.f32 %v812, 0.0
      %v1030 = vmax.f32 %v814, 0.0
      %v1031 = vmax.f32 %v883, 0.0
      %v1032 = vmax.f32 %v885, 0.0
      %v1033 = vmax.f32 %v954, 0.0
      %v1034 = vmax.f32 %v956, 0.0
      %v1035 = vmax.f32 %v1025, 0.0
      %v1036 = vmax.f32 %v1027, 0.0
      %v1037 = vxor.u32 %v1029, 2147483648
      %v1038 = vxor.u32 %v1030, 2147483648
      %v1039 = vxor.u32 %v1031, 2147483648
      %v1040 = vxor.u32 %v1032, 2147483648
      %v1041 = vxor.u32 %v1033, 2147483648
      %v1042 = vxor.u32 %v1034, 2147483648
      %v1043 = vxor.u32 %v1035, 2147483648
      %v1044 = vxor.u32 %v1036, 2147483648
      %v1045 = vmul.f32 %v1037, 1.442695
      %v1046 = vpow.pop %v1045
      %v1047 = vmul.f32 %v1038, 1.442695
      %v1048 = vpow.pop %v1047
      %v1049 = vmul.f32 %v1039, 1.442695
      %v1050 = vpow.pop %v1049
      %v1051 = vmul.f32 %v1040, 1.442695
      %v1052 = vpow.pop %v1051
      %v1053 = vmul.f32 %v1041, 1.442695
      %v1054 = vpow.pop %v1053
      %v1055 = vmul.f32 %v1042, 1.442695
      %v1056 = vpow.pop %v1055
      %v1057 = vmul.f32 %v1043, 1.442695
      %v1058 = vpow.pop %v1057
      %v1059 = vmul.f32 %v1044, 1.442695
      %v1060 = vpow.pop %v1059
      %v1061 = vadd.f32 %v1046, 1.0
      %v1062 = vadd.f32 %v1048, 1.0
      %v1063 = vadd.f32 %v1050, 1.0
      %v1064 = vadd.f32 %v1052, 1.0
      %v1065 = vadd.f32 %v1054, 1.0
      %v1066 = vadd.f32 %v1056, 1.0
      %v1067 = vadd.f32 %v1058, 1.0
      %v1068 = vadd.f32 %v1060, 1.0
      %v1069 = vrcp.pop %v1061
      %v1070 = vmul.f32 1.0, %v1069
      %v1071 = vrcp.pop %v1062
      %v1072 = vmul.f32 1.0, %v1071
      %v1073 = vrcp.pop %v1063
      %v1074 = vmul.f32 1.0, %v1073
      %v1075 = vrcp.pop %v1064
      %v1076 = vmul.f32 1.0, %v1075
      %v1077 = vrcp.pop %v1065
      %v1078 = vmul.f32 1.0, %v1077
      %v1079 = vrcp.pop %v1066
      %v1080 = vmul.f32 1.0, %v1079
      %v1081 = vrcp.pop %v1067
      %v1082 = vmul.f32 1.0, %v1081
      %v1083 = vrcp.pop %v1068
      %v1084 = vmul.f32 1.0, %v1083
      %1085 = vst [vmem:[%s224] sm:$0xff] %v1070
      %1086 = vst [vmem:[%s224 + $0x8] sm:$0xff] %v1072
      %1087 = vst [vmem:[%s224 + $0x10] sm:$0xff] %v1074
      %1088 = vst [vmem:[%s224 + $0x18] sm:$0xff] %v1076
      %1089 = vst [vmem:[%s224 + $0x20] sm:$0xff] %v1078
      %1090 = vst [vmem:[%s224 + $0x28] sm:$0xff] %v1080
      %1091 = vst [vmem:[%s224 + $0x30] sm:$0xff] %v1082
      %1092 = vst [vmem:[%s224 + $0x38] sm:$0xff] %v1084
      %p1093 = scmp.lt.s32.totalorder %s16, 1
      %s1094 = scalar_select %p1093, %s16, 1
      %s1095 = smul.addr %s1094, 8
      %s1096 = smul.addr %s1095, 8
      %s1097 = scalar_lea.vmem %s5, %s1096
      // Predicated region
      $region41: #{upsample_conv_forward.3} parent=39 // pred_check
        %p1098 = pneg %p144
      $region42: #{upsample_conv_forward.3} parent=39 // pred_check_branch
        %1100 = sbr.rel (%p1098) target = $region44
      $region43: #{upsample_conv_forward.3} parent=39 // pred_region
        _
      $region44: #{upsample_conv_forward.3} parent=39 // pred_fallthru
        _
    $region40: #{upsample_conv_forward.3} parent=5 // pred_fallthru
      _
    %p1101 = scmp.le.s32.totalorder 2, %s11
    // Predicated region
    $region45: #{upsample_conv_forward.3} parent=5 // pred_check
      %p1102 = pneg %p1101
    $region46: #{upsample_conv_forward.3} parent=5 // pred_check_branch
      %1104 = sbr.rel (%p1102) target = $region48
    $region47: #{upsample_conv_forward.3} parent=5 // pred_region
      %s1105 = ssub.s32 %s11, 2
      // Predicated region
      $region49: #{upsample_conv_forward.3} parent=47 // pred_check
        %p1106 = pneg %p150
      $region50: #{upsample_conv_forward.3} parent=47 // pred_check_branch
        %1108 = sbr.rel (%p1106) target = $region52
      $region51: #{upsample_conv_forward.3} parent=47 // pred_region
        %p1109 = scmp.lt.s32.totalorder %s17, 1
        %s1110 = scalar_select %p1109, %s17, 1
        %s1111 = smul.addr %s1110, 8
        %s1112 = smul.addr %s1111, 8
        %s1113 = scalar_lea.vmem %s5, %s1112
      $region52: #{upsample_conv_forward.3} parent=47 // pred_fallthru
        _
    $region48: #{upsample_conv_forward.3} parent=5 // pred_fallthru
      _
  $region6: #{upsample_conv_forward.3} parent=0 // loop_footer
    %s15 = sadd.s32 1, %s11
  $region7: #{upsample_conv_forward.3} parent=0 // loop_footer_branch
    %10 = sbr.rel target = $region3
  $region8: #{upsample_conv_forward.3} parent=0 // loop_exit
    _

// kernel: upsample_conv_forward.2
$region0: #{upsample_conv_forward.2}
  #allocation0 [shape = 'u32[]', space=smem, size = 0x4, offset = 0x4, fixed_abs, tag = 'smem constant byte address 0x4 - core index']
  #allocation1 [shape = 'u32[144,128]{1,0:T(1,128)}', space=vmem, size = 0x12000, scoped, tag = 'internal scratch']
  %s0 = inlined_call_operand.vmem [shape: f32[2,16,256], index: 0, kind: input, shape index: {}]
  %s1 = inlined_call_operand.vmem [shape: f32[16,1], index: 1, kind: input, shape index: {}]
  %s2 = inlined_call_operand.vmem [shape: f32[16,1], index: 2, kind: input, shape index: {}]
  %s3 = inlined_call_operand.vmem [shape: f32[32,144], index: 3, kind: input, shape index: {}]
  %s4 = inlined_call_operand.vmem [shape: f32[32,1], index: 4, kind: input, shape index: {}]
  %s5 = inlined_call_operand.vmem [shape: f32[8,1], index: 5, kind: input, shape index: {}]
  %s6 = inlined_call_operand.vmem [shape: f32[8,1], index: 6, kind: input, shape index: {}]
  %s7 = inlined_call_operand.vmem [shape: f32[2,32,256], index: 7, kind: output, shape index: {0}]
  %s8 = inlined_call_operand.vmem [shape: f32[8,1], index: 8, kind: output, shape index: {1}]
  %s9 = inlined_call_operand.vmem [shape: f32[8,1], index: 9, kind: output, shape index: {2}]
  %10 = xla_tuple %s7, %s8, %s9
  %s11 = sld [smem:[#allocation0]]
  $region54: #{upsample_conv_forward.2} parent=0
    _
  %s13 = ssub.s32 1, %s11
  %s14 = scalar_select 0, %s13, %s11
  // Predicated region
  $region2: #{upsample_conv_forward.2} parent=0 // pred_check
    _
  $region3: #{upsample_conv_forward.2} parent=0 // pred_check_branch
    %16 = sbr.rel (0) target = $region5
  $region4: #{upsample_conv_forward.2} parent=0 // pred_region
    _
  $region5: #{upsample_conv_forward.2} parent=0 // pred_fallthru
    _
  // Predicated region
  $region6: #{upsample_conv_forward.2} parent=0 // pred_check
    _
  $region7: #{upsample_conv_forward.2} parent=0 // pred_check_branch
    %18 = sbr.rel (0) target = $region9
  $region8: #{upsample_conv_forward.2} parent=0 // pred_region
    _
  $region9: #{upsample_conv_forward.2} parent=0 // pred_fallthru
    _
  // Predicated region
  $region10: #{upsample_conv_forward.2} parent=0 // pred_check
    _
  $region11: #{upsample_conv_forward.2} parent=0 // pred_check_branch
    %20 = sbr.rel (0) target = $region13
  $region12: #{upsample_conv_forward.2} parent=0 // pred_region
    _
  $region13: #{upsample_conv_forward.2} parent=0 // pred_fallthru
    _
  // Predicated region
  $region14: #{upsample_conv_forward.2} parent=0 // pred_check
    _
  $region15: #{upsample_conv_forward.2} parent=0 // pred_check_branch
    %22 = sbr.rel (0) target = $region17
  $region16: #{upsample_conv_forward.2} parent=0 // pred_region
    _
  $region17: #{upsample_conv_forward.2} parent=0 // pred_fallthru
    _
  // Predicated region
  $region18: #{upsample_conv_forward.2} parent=0 // pred_check
    _
  $region19: #{upsample_conv_forward.2} parent=0 // pred_check_branch
    %24 = sbr.rel (0) target = $region21
  $region20: #{upsample_conv_forward.2} parent=0 // pred_region
    _
  $region21: #{upsample_conv_forward.2} parent=0 // pred_fallthru
    _
  // Predicated region
  $region22: #{upsample_conv_forward.2} parent=0 // pred_check
    _
  $region23: #{upsample_conv_forward.2} parent=0 // pred_check_branch
    %26 = sbr.rel (0) target = $region25
  $region24: #{upsample_conv_forward.2} parent=0 // pred_region
    _
  $region25: #{upsample_conv_forward.2} parent=0 // pred_fallthru
    _
  // Predicated region
  $region26: #{upsample_conv_forward.2} parent=0 // pred_check
    _
  $region27: #{upsample_conv_forward.2} parent=0 // pred_check_branch
    %28 = sbr.rel (0) target = $region29
  $region28: #{upsample_conv_forward.2} parent=0 // pred_region
    _
  $region29: #{upsample_conv_forward.2} parent=0 // pred_fallthru
    _
  %v29 = vld [vmem:[%s0] sm:$0xff]
  %v30 = vld [vmem:[%s0 + $0x8] sm:$0xff]
  %v31 = vld [vmem:[%s0 + $0x10] sm:$0xff]
  %v32 = vld [vmem:[%s0 + $0x18] sm:$0xff]
  %v33 = vld [vmem:[%s0 + $0x20] sm:$0xff]
  %v34 = vld [vmem:[%s0 + $0x28] sm:$0xff]
  %v35 = vld [vmem:[%s0 + $0x30] sm:$0xff]
  %v36 = vld [vmem:[%s0 + $0x38] sm:$0xff]
  %v37 = vadd.f32 %v29, %v30
  %38 = vadd.xlane.f32.xlu0 %v37
  %v39 = vpop.xlane.xlu0 %38
  %v40 = vadd.f32 %v31, %v32
  %41 = vadd.xlane.f32.xlu0 %v40
  %v42 = vpop.xlane.xlu0 %41
  %v43 = vadd.f32 %v39, 0.0
  %v44 = vadd.f32 %v42, 0.0
  %v45 = vmul.f32 %v29, %v29
  %v46 = vmul.f32 %v30, %v30
  %v47 = vmul.f32 %v31, %v31
  %v48 = vmul.f32 %v32, %v32
  %v49 = vadd.f32 %v45, %v46
  %50 = vadd.xlane.f32.xlu0 %v49
  %v51 = vpop.xlane.xlu0 %50
  %v52 = vadd.f32 %v47, %v48
  %53 = vadd.xlane.f32.xlu0 %v52
  %v54 = vpop.xlane.xlu0 %53
  %v55 = vadd.f32 %v51, 0.0
  %v56 = vadd.f32 %v54, 0.0
  %v57 = vadd.f32 %v33, %v34
  %58 = vadd.xlane.f32.xlu0 %v57
  %v59 = vpop.xlane.xlu0 %58
  %v60 = vadd.f32 %v35, %v36
  %61 = vadd.xlane.f32.xlu0 %v60
  %v62 = vpop.xlane.xlu0 %61
  %v63 = vadd.f32 %v43, %v59
  %v64 = vadd.f32 %v44, %v62
  %v65 = vmul.f32 %v33, %v33
  %v66 = vmul.f32 %v34, %v34
  %v67 = vmul.f32 %v35, %v35
  %v68 = vmul.f32 %v36, %v36
  %v69 = vadd.f32 %v65, %v66
  %70 = vadd.xlane.f32.xlu0 %v69
  %v71 = vpop.xlane.xlu0 %70
  %v72 = vadd.f32 %v67, %v68
  %73 = vadd.xlane.f32.xlu0 %v72
  %v74 = vpop.xlane.xlu0 %73
  %v75 = vadd.f32 %v55, %v71
  %v76 = vadd.f32 %v56, %v74
  %v77 = vrcp.pop 512.0
  %v78 = vmul.f32 %v63, %v77
  %v79 = vmul.f32 %v64, %v77
  %v80 = vmul.f32 %v75, %v77
  %v81 = vmul.f32 %v76, %v77
  %v82 = vmul.f32 %v78, %v78
  %v83 = vmul.f32 %v79, %v79
  %v84 = vsub.f32 %v80, %v82
  %v85 = vsub.f32 %v81, %v83
  %v86 = vld [vmem:[%s1] sm:$0xff]
  %v87 = vld [vmem:[%s1 + $0x8] sm:$0xff]
  %v88 = vadd.f32 %v84, 1e-05
  %v89 = vadd.f32 %v85, 1e-05
  %v90 = vrsqrt.pop %v88
  %v91 = vrsqrt.pop %v89
  %v92 = vmul.f32 %v86, %v90
  %v93 = vmul.f32 %v87, %v91
  %v94 = vld [vmem:[%s2] sm:$0xff]
  %v95 = vld [vmem:[%s2 + $0x8] sm:$0xff]
  %v96 = vmul.f32 %v78, %v92
  %v97 = vmul.f32 %v79, %v93
  %v98 = vsub.f32 %v94, %v96
  %v99 = vsub.f32 %v95, %v97
  %v100 = vld [vmem:[%s3] sm:$0xff]
  %v101 = vld [vmem:[%s3 + $0x8] sm:$0xff]
  %v102 = vld [vmem:[%s3 + $0x10] sm:$0xff]
  %v103 = vld [vmem:[%s3 + $0x18] sm:$0xff]
  %v104 = vld [vmem:[%s3 + $0x20] sm:$0xff]
  %v105 = vld [vmem:[%s3 + $0x28] sm:$0xff]
  %v106 = vld [vmem:[%s3 + $0x30] sm:$0xff]
  %v107 = vld [vmem:[%s3 + $0x38] sm:$0xff]
  %v108 = vld [vmem:[%s4] sm:$0xff]
  %v109 = vld [vmem:[%s4 + $0x8] sm:$0xff]
  %v110 = vld [vmem:[%s4 + $0x10] sm:$0xff]
  %v111 = vld [vmem:[%s4 + $0x18] sm:$0xff]
  %113 = vset.pattern.permute.xlu0 0
  %114 = vperm.xlu0 %113, %v92
  %v115 = vpop.permute.xlu0 %114
  %118 = vset.pattern.permute.xlu0 0
  %119 = vperm.xlu0 %118, %v93
  %v120 = vpop.permute.xlu0 %119
  %v122 = vmul.f32 %v29, %v115
  %v123 = vmul.f32 %v30, %v115
  %v124 = vmul.f32 %v31, %v120
  %v125 = vmul.f32 %v32, %v120
  %127 = vset.pattern.permute.xlu0 0
  %128 = vperm.xlu0 %127, %v98
  %v129 = vpop.permute.xlu0 %128
  %132 = vset.pattern.permute.xlu0 0
  %133 = vperm.xlu0 %132, %v99
  %v134 = vpop.permute.xlu0 %133
  %v136 = vadd.f32 %v122, %v129
  %v137 = vadd.f32 %v123, %v129
  %v138 = vadd.f32 %v124, %v134
  %v139 = vadd.f32 %v125, %v134
  %v140 = vlaneseq
  %v141 = vand.u32 %v140, 127
  %v142 = vadd.s32 %v141, 128
  %vm143 = vcmp.lt.s32.totalorder %v141, 0
  %v144 = vsub.s32 0, %v141
  %v145 = vsel %vm143, %v144, %v141
  %v146 = vshrl.u32 %v145, 4
  %v147 = vand.u32 %v145, 15
  %v148 = vsub.s32 0, %v147
  %v149 = vsel %vm143, %v148, %v147
  %vm150 = vcmp.lt.s32.totalorder %v142, 0
  %v151 = vsub.s32 0, %v142
  %v152 = vsel %vm150, %v151, %v142
  %v153 = vshrl.u32 %v152, 4
  %v154 = vand.u32 %v152, 15
  %v155 = vsub.s32 0, %v154
  %v156 = vsel %vm150, %v155, %v154
  %vm157 = vcmp.ne.s32.totalorder %v149, 0
  %vm158 = vcmp.ne.s32.totalorder %v156, 0
  %vm159 = vcmp.lt.s32.totalorder %v149, 0
  %vm160 = vcmp.lt.s32.totalorder %v156, 0
  %vm161 = vmand %vm159, %vm157
  %vm162 = vmand %vm160, %vm158
  %v163 = vadd.s32 %v149, 16
  %v164 = vadd.s32 %v156, 16
  %v165 = vsel %vm161, %v163, %v149
  %v166 = vsel %vm162, %v164, %v156
  %171 = vrot.lane.b32.xlu0 %v136, 17
  %v172 = vpop.permute.xlu0 %171
  %173 = vrot.lane.b32.xlu0 %v137, 17
  %v174 = vpop.permute.xlu0 %173
  %175 = vrot.lane.b32.xlu0 %v138, 17
  %v176 = vpop.permute.xlu0 %175
  %177 = vrot.lane.b32.xlu0 %v139, 17
  %v178 = vpop.permute.xlu0 %177
  %vm179 = vcmask 138240
  %v180 = vsel %vm179, %v172, %v174
  %v181 = vsel %vm179, %v176, %v178
  %v186 = vsel %vm179, 0.0, %v172
  %v187 = vsel %vm179, 0.0, %v176
  %vm188 = vcmp.gt.s32.totalorder %v165, 0
  %vm189 = vcmp.gt.s32.totalorder %v166, 0
  %v190 = vsel %vm188, 1, 0
  %v191 = vsel %vm189, 1, 0
  %vm192 = vcmp.eq.s32.totalorder %v190, 1
  %vm193 = vcmp.eq.s32.totalorder %v191, 1
  %v194 = vsel %vm192, %v186, 0.0
  %v195 = vsel %vm193, %v180, 0.0
  %v196 = vsel %vm192, %v187, 0.0
  %v197 = vsel %vm193, %v181, 0.0
  %198 = vrot.lane.b32.xlu0 %v136, 16
  %v199 = vpop.permute.xlu0 %198
  %200 = vrot.lane.b32.xlu0 %v137, 16
  %v201 = vpop.permute.xlu0 %200
  %202 = vrot.lane.b32.xlu0 %v138, 16
  %v203 = vpop.permute.xlu0 %202
  %204 = vrot.lane.b32.xlu0 %v139, 16
  %v205 = vpop.permute.xlu0 %204
  %vm206 = vcmask 130048
  %v207 = vsel %vm206, %v199, %v201
  %v208 = vsel %vm206, %v203, %v205
  %v213 = vsel %vm206, 0.0, %v199
  %v214 = vsel %vm206, 0.0, %v203
  %215 = vrot.lane.b32.xlu0 %v136, 15
  %v216 = vpop.permute.xlu0 %215
  %217 = vrot.lane.b32.xlu0 %v137, 15
  %v218 = vpop.permute.xlu0 %217
  %219 = vrot.lane.b32.xlu0 %v138, 15
  %v220 = vpop.permute.xlu0 %219
  %221 = vrot.lane.b32.xlu0 %v139, 15
  %v222 = vpop.permute.xlu0 %221
  %vm223 = vcmask 121856
  %v224 = vsel %vm223, %v216, %v218
  %v225 = vsel %vm223, %v220, %v222
  %v230 = vsel %vm223, 0.0, %v216
  %v231 = vsel %vm223, 0.0, %v220
  %vm232 = vcmp.lt.s32.totalorder %v165, 15
  %vm233 = vcmp.lt.s32.totalorder %v166, 15
  %v234 = vsel %vm232, 1, 0
  %v235 = vsel %vm233, 1, 0
  %vm236 = vcmp.eq.s32.totalorder %v234, 1
  %vm237 = vcmp.eq.s32.totalorder %v235, 1
  %v238 = vsel %vm236, %v230, 0.0
  %v239 = vsel %vm237, %v224, 0.0
  %v240 = vsel %vm236, %v231, 0.0
  %v241 = vsel %vm237, %v225, 0.0
  %242 = vrot.lane.b32.xlu0 %v136, 1
  %v243 = vpop.permute.xlu0 %242
  %244 = vrot.lane.b32.xlu0 %v137, 1
  %v245 = vpop.permute.xlu0 %244
  %246 = vrot.lane.b32.xlu0 %v138, 1
  %v247 = vpop.permute.xlu0 %246
  %248 = vrot.lane.b32.xlu0 %v139, 1
  %v249 = vpop.permute.xlu0 %248
  %vm250 = vcmask 7168
  %v251 = vsel %vm250, %v243, %v245
  %v252 = vsel %vm250, %v247, %v249
  %v257 = vsel %vm250, 0.0, %v243
  %v258 = vsel %vm250, 0.0, %v247
  %v259 = vsel %vm192, %v257, 0.0
  %v260 = vsel %vm193, %v251, 0.0
  %v261 = vsel %vm192, %v258, 0.0
  %v262 = vsel %vm193, %v252, 0.0
  %263 = vrot.lane.b32.xlu0 %v136, 127
  %v264 = vpop.permute.xlu0 %263
  %265 = vrot.lane.b32.xlu0 %v137, 127
  %v266 = vpop.permute.xlu0 %265
  %267 = vrot.lane.b32.xlu0 %v138, 127
  %v268 = vpop.permute.xlu0 %267
  %269 = vrot.lane.b32.xlu0 %v139, 127
  %v270 = vpop.permute.xlu0 %269
  %vm271 = vcmask 1039360
  %v272 = vsel %vm271, %v264, %v266
  %v273 = vsel %vm271, %v268, %v270
  %v278 = vsel %vm271, %v266, 0.0
  %v279 = vsel %vm271, %v270, 0.0
  %v280 = vsel %vm236, %v272, 0.0
  %v281 = vsel %vm237, %v278, 0.0
  %v282 = vsel %vm236, %v273, 0.0
  %v283 = vsel %vm237, %v279, 0.0
  %284 = vrot.lane.b32.xlu0 %v136, 113
  %v285 = vpop.permute.xlu0 %284
  %286 = vrot.lane.b32.xlu0 %v137, 113
  %v287 = vpop.permute.xlu0 %286
  %288 = vrot.lane.b32.xlu0 %v138, 113
  %v289 = vpop.permute.xlu0 %288
  %290 = vrot.lane.b32.xlu0 %v139, 113
  %v291 = vpop.permute.xlu0 %290
  %vm292 = vcmask 924672
  %v293 = vsel %vm292, %v285, %v287
  %v294 = vsel %vm292, %v289, %v291
  %v299 = vsel %vm292, %v287, 0.0
  %v300 = vsel %vm292, %v291, 0.0
  %v301 = vsel %vm192, %v293, 0.0
  %v302 = vsel %vm193, %v299, 0.0
  %v303 = vsel %vm192, %v294, 0.0
  %v304 = vsel %vm193, %v300, 0.0
  %305 = vrot.lane.b32.xlu0 %v136, 112
  %v306 = vpop.permute.xlu0 %305
  %307 = vrot.lane.b32.xlu0 %v137, 112
  %v308 = vpop.permute.xlu0 %307
  %309 = vrot.lane.b32.xlu0 %v138, 112
  %v310 = vpop.permute.xlu0 %309
  %311 = vrot.lane.b32.xlu0 %v139, 112
  %v312 = vpop.permute.xlu0 %311
  %vm313 = vcmask 916480
  %v314 = vsel %vm313, %v306, %v308
  %v315 = vsel %vm313, %v310, %v312
  %v320 = vsel %vm313, %v308, 0.0
  %v321 = vsel %vm313, %v312, 0.0
  %322 = vrot.lane.b32.xlu0 %v136, 111
  %v323 = vpop.permute.xlu0 %322
  %324 = vrot.lane.b32.xlu0 %v137, 111
  %v325 = vpop.permute.xlu0 %324
  %326 = vrot.lane.b32.xlu0 %v138, 111
  %v327 = vpop.permute.xlu0 %326
  %328 = vrot.lane.b32.xlu0 %v139, 111
  %v329 = vpop.permute.xlu0 %328
  %vm330 = vcmask 908288
  %v331 = vsel %vm330, %v323, %v325
  %v332 = vsel %vm330, %v327, %v329
  %v337 = vsel %vm330, %v325, 0.0
  %v338 = vsel %vm330, %v329, 0.0
  %v339 = vsel %vm236, %v331, 0.0
  %v340 = vsel %vm237, %v337, 0.0
  %v341 = vsel %vm236, %v332, 0.0
  %v342 = vsel %vm237, %v338, 0.0
  %344 = vset.pattern.permute.xlu0 0
  %345 = vperm.xlu0 %344, %v108
  %v346 = vpop.permute.xlu0 %345
  %349 = vset.pattern.permute.xlu0 0
  %350 = vperm.xlu0 %349, %v109
  %v351 = vpop.permute.xlu0 %350
  %354 = vset.pattern.permute.xlu0 0
  %355 = vperm.xlu0 %354, %v110
  %v356 = vpop.permute.xlu0 %355
  %359 = vset.pattern.permute.xlu0 0
  %360 = vperm.xlu0 %359, %v111
  %v361 = vpop.permute.xlu0 %360
  %v364 = vsel %vm206, %v101, 0
  %v367 = vsel %vm206, %v103, 0
  %v370 = vsel %vm206, %v105, 0
  %v373 = vsel %vm206, %v107, 0
  %375 = vmatprep.subr.mxu0 %v321
  %376 = vmatpush1.msra.mxu0 %v315
  %377 = vmatprep.subr.mxu0 %v320
  %378 = vmatpush1.msra.mxu0 %v314
  %379 = vmatprep.subr.mxu0 %v304
  %380 = vmatpush1.msra.mxu0 %v303
  %381 = vmatprep.subr.mxu0 %v302
  %382 = vmatpush1.msra.mxu0 %v301
  %383 = vmatprep.subr.mxu0 %v283
  %384 = vmatpush1.msra.mxu0 %v282
  %385 = vmatprep.subr.mxu0 %v281
  %386 = vmatpush1.msra.mxu0 %v280
  %387 = vmatprep.subr.mxu0 %v139
  %388 = vmatpush1.msra.mxu0 %v138
  %389 = vmatprep.subr.mxu0 %v137
  %390 = vmatpush1.msra.mxu0 %v136
  %391 = vmatprep.subr.mxu0 %v262
  %392 = vmatpush1.msra.mxu0 %v261
  %393 = vmatprep.subr.mxu0 %v260
  %394 = vmatpush1.msra.mxu0 %v259
  %395 = vmatprep.subr.mxu0 %v241
  %396 = vmatpush1.msra.mxu0 %v240
  %397 = vmatprep.subr.mxu0 %v239
  %398 = vmatpush1.msra.mxu0 %v238
  %399 = vmatprep.subr.mxu0 %v208
  %400 = vmatpush1.msra.mxu0 %v214
  %401 = vmatprep.subr.mxu0 %v207
  %402 = vmatpush1.msra.mxu0 %v213
  %403 = vmatprep.subr.mxu0 %v197
  %404 = vmatpush1.msra.mxu0 %v196
  %405 = vmatprep.subr.mxu0 %v195
  %406 = vmatpush1.msra.mxu0 %v194
  %407 = vmatprep.subr.mxu0 0.0
  %408 = vmatpush2.msra.mxu0 0.0
  %409 = vmatprep.subr.mxu0 0.0
  %410 = vmatpush2.msra.mxu0 0.0
  %411 = vmatprep.subr.mxu0 0.0
  %412 = vmatpush2.msra.mxu0 0.0
  %413 = vmatprep.subr.mxu0 0.0
  %414 = vmatpush2.msra.mxu0 0.0
  %415 = vmatprep.subr.mxu0 0.0
  %416 = vmatpush2.msra.mxu0 0.0
  %417 = vmatprep.subr.mxu0 0.0
  %418 = vmatpush2.msra.mxu0 0.0
  %419 = vmatprep.subr.mxu0 0.0
  %420 = vmatpush2.msra.mxu0 0.0
  %421 = vmatprep.subr.mxu0 0.0
  %422 = vmatpush2.msra.mxu0 0.0
  %423 = vmatprep.subr.mxu0 0.0
  %424 = vmatpush2.msra.mxu0 0.0
  %425 = vmatprep.subr.mxu0 0.0
  %426 = vmatpush2.msra.mxu0 0.0
  %427 = vmatprep.subr.mxu0 0.0
  %428 = vmatpush2.msra.mxu0 0.0
  %429 = vmatprep.subr.mxu0 0.0
  %430 = vmatpush2.msra.mxu0 0.0
  %431 = vmatprep.subr.mxu0 0.0
  %432 = vmatpush2.msra.mxu0 0.0
  %433 = vmatprep.subr.mxu0 0.0
  %434 = vmatpush2.msra.mxu0 0.0
  %435 = vmatprep.subr.mxu0 %v342
  %436 = vmatpush2.msra.mxu0 %v341
  %437 = vmatprep.subr.mxu0 %v340
  %438 = vmatpush2.msra.mxu0 %v339
  %439 = vmatprep.mubr.f32.mxu0 %v364
  %440 = vmatmul.mubr.f32.gmra.mxu0 %v100
  %v441 = vpop.f32.mrf.mxu0
  %v442 = vadd.f32 %v346, %v441
  %v443 = vpop.f32.mrf.mxu0
  %v444 = vadd.f32 %v346, %v443
  %445 = vmatprep.mubr.f32.mxu0 %v367
  %446 = vmatmul.mubr.f32.gmra.mxu0 %v102
  %v447 = vpop.f32.mrf.mxu0
  %v448 = vadd.f32 %v351, %v447
  %v449 = vpop.f32.mrf.mxu0
  %v450 = vadd.f32 %v351, %v449
  %451 = vmatprep.mubr.f32.mxu0 %v370
  %452 = vmatmul.mubr.f32.gmra.mxu0 %v104
  %v453 = vpop.f32.mrf.mxu0
  %v454 = vadd.f32 %v356, %v453
  %v455 = vpop.f32.mrf.mxu0
  %v456 = vadd.f32 %v356, %v455
  %457 = vmatprep.mubr.f32.mxu0 %v373
  %458 = vmatmul.mubr.f32.gmra.mxu0 %v106
  %v459 = vpop.f32.mrf.mxu0
  %v460 = vadd.f32 %v361, %v459
  %v461 = vpop.f32.mrf.mxu0
  %v462 = vadd.f32 %v361, %v461
  %463 = vdwg.mxu0
  %v464 = vmax.f32 %v442, 0.0
  %v465 = vmax.f32 %v444, 0.0
  %v466 = vmax.f32 %v448, 0.0
  %v467 = vmax.f32 %v450, 0.0
  %v468 = vmax.f32 %v454, 0.0
  %v469 = vmax.f32 %v456, 0.0
  %v470 = vmax.f32 %v460, 0.0
  %v471 = vmax.f32 %v462, 0.0
  %472 = vst [vmem:[%s7] sm:$0xff] %v464
  %473 = vst [vmem:[%s7 + $0x8] sm:$0xff] %v465
  %474 = vst [vmem:[%s7 + $0x10] sm:$0xff] %v466
  %475 = vst [vmem:[%s7 + $0x18] sm:$0xff] %v467
  %476 = vst [vmem:[%s7 + $0x20] sm:$0xff] %v468
  %477 = vst [vmem:[%s7 + $0x28] sm:$0xff] %v469
  %478 = vst [vmem:[%s7 + $0x30] sm:$0xff] %v470
  %479 = vst [vmem:[%s7 + $0x38] sm:$0xff] %v471
  %v480 = vadd.f32 %v464, %v465
  %481 = vadd.xlane.f32.xlu0 %v480
  %v482 = vpop.xlane.xlu0 %481
  %v483 = vadd.f32 %v466, %v467
  %484 = vadd.xlane.f32.xlu0 %v483
  %v485 = vpop.xlane.xlu0 %484
  %v486 = vadd.f32 %v468, %v469
  %487 = vadd.xlane.f32.xlu0 %v486
  %v488 = vpop.xlane.xlu0 %487
  %v489 = vadd.f32 %v470, %v471
  %490 = vadd.xlane.f32.xlu0 %v489
  %v491 = vpop.xlane.xlu0 %490
  %v492 = vmul.f32 %v464, %v464
  %v493 = vmul.f32 %v465, %v465
  %v494 = vmul.f32 %v466, %v466
  %v495 = vmul.f32 %v467, %v467
  %v496 = vmul.f32 %v468, %v468
  %v497 = vmul.f32 %v469, %v469
  %v498 = vmul.f32 %v470, %v470
  %v499 = vmul.f32 %v471, %v471
  %v500 = vadd.f32 %v492, %v493
  %501 = vadd.xlane.f32.xlu0 %v500
  %v502 = vpop.xlane.xlu0 %501
  %v503 = vadd.f32 %v494, %v495
  %504 = vadd.xlane.f32.xlu0 %v503
  %v505 = vpop.xlane.xlu0 %504
  %v506 = vadd.f32 %v496, %v497
  %507 = vadd.xlane.f32.xlu0 %v506
  %v508 = vpop.xlane.xlu0 %507
  %v509 = vadd.f32 %v498, %v499
  %510 = vadd.xlane.f32.xlu0 %v509
  %v511 = vpop.xlane.xlu0 %510
  %v512 = vadd.f32 %v482, 0.0
  %v513 = vadd.f32 %v502, 0.0
  %v514 = vadd.f32 %v512, %v485
  %v515 = vadd.f32 %v513, %v505
  %v516 = vadd.f32 %v514, %v488
  %v517 = vadd.f32 %v515, %v508
  %v518 = vadd.f32 %v516, %v491
  %v519 = vadd.f32 %v517, %v511
  %v520 = vmul.f32 %v33, %v115
  %v521 = vmul.f32 %v34, %v115
  %v522 = vmul.f32 %v35, %v120
  %v523 = vmul.f32 %v36, %v120
  %v524 = vadd.f32 %v520, %v129
  %v525 = vadd.f32 %v521, %v129
  %v526 = vadd.f32 %v522, %v134
  %v527 = vadd.f32 %v523, %v134
  %532 = vrot.lane.b32.xlu0 %v524, 17
  %v533 = vpop.permute.xlu0 %532
  %534 = vrot.lane.b32.xlu0 %v525, 17
  %v535 = vpop.permute.xlu0 %534
  %536 = vrot.lane.b32.xlu0 %v526, 17
  %v537 = vpop.permute.xlu0 %536
  %538 = vrot.lane.b32.xlu0 %v527, 17
  %v539 = vpop.permute.xlu0 %538
  %v540 = vsel %vm179, %v533, %v535
  %v541 = vsel %vm179, %v537, %v539
  %v546 = vsel %vm179, 0.0, %v533
  %v547 = vsel %vm179, 0.0, %v537
  %v548 = vsel %vm192, %v546, 0.0
  %v549 = vsel %vm193, %v540, 0.0
  %v550 = vsel %vm192, %v547, 0.0
  %v551 = vsel %vm193, %v541, 0.0
  %552 = vrot.lane.b32.xlu0 %v524, 16
  %v553 = vpop.permute.xlu0 %552
  %554 = vrot.lane.b32.xlu0 %v525, 16
  %v555 = vpop.permute.xlu0 %554
  %556 = vrot.lane.b32.xlu0 %v526, 16
  %v557 = vpop.permute.xlu0 %556
  %558 = vrot.lane.b32.xlu0 %v527, 16
  %v559 = vpop.permute.xlu0 %558
  %v560 = vsel %vm206, %v553, %v555
  %v561 = vsel %vm206, %v557, %v559
  %v566 = vsel %vm206, 0.0, %v553
  %v567 = vsel %vm206, 0.0, %v557
  %568 = vrot.lane.b32.xlu0 %v524, 15
  %v569 = vpop.permute.xlu0 %568
  %570 = vrot.lane.b32.xlu0 %v525, 15
  %v571 = vpop.permute.xlu0 %570
  %572 = vrot.lane.b32.xlu0 %v526, 15
  %v573 = vpop.permute.xlu0 %572
  %574 = vrot.lane.b32.xlu0 %v527, 15
  %v575 = vpop.permute.xlu0 %574
  %v576 = vsel %vm223, %v569, %v571
  %v577 = vsel %vm223, %v573, %v575
  %v582 = vsel %vm223, 0.0, %v569
  %v583 = vsel %vm223, 0.0, %v573
  %v584 = vsel %vm236, %v582, 0.0
  %v585 = vsel %vm237, %v576, 0.0
  %v586 = vsel %vm236, %v583, 0.0
  %v587 = vsel %vm237, %v577, 0.0
  %588 = vrot.lane.b32.xlu0 %v524, 1
  %v589 = vpop.permute.xlu0 %588
  %590 = vrot.lane.b32.xlu0 %v525, 1
  %v591 = vpop.permute.xlu0 %590
  %592 = vrot.lane.b32.xlu0 %v526, 1
  %v593 = vpop.permute.xlu0 %592
  %594 = vrot.lane.b32.xlu0 %v527, 1
  %v595 = vpop.permute.xlu0 %594
  %v596 = vsel %vm250, %v589, %v591
  %v597 = vsel %vm250, %v593, %v595
  %v602 = vsel %vm250, 0.0, %v589
  %v603 = vsel %vm250, 0.0, %v593
  %v604 = vsel %vm192, %v602, 0.0
  %v605 = vsel %vm193, %v596, 0.0
  %v606 = vsel %vm192, %v603, 0.0
  %v607 = vsel %vm193, %v597, 0.0
  %608 = vrot.lane.b32.xlu0 %v524, 127
  %v609 = vpop.permute.xlu0 %608
  %610 = vrot.lane.b32.xlu0 %v525, 127
  %v611 = vpop.permute.xlu0 %610
  %612 = vrot.lane.b32.xlu0 %v526, 127
  %v613 = vpop.permute.xlu0 %612
  %614 = vrot.lane.b32.xlu0 %v527, 127
  %v615 = vpop.permute.xlu0 %614
  %v616 = vsel %vm271, %v609, %v611
  %v617 = vsel %vm271, %v613, %v615
  %v622 = vsel %vm271, %v611, 0.0
  %v623 = vsel %vm271, %v615, 0.0
  %v624 = vsel %vm236, %v616, 0.0
  %v625 = vsel %vm237, %v622, 0.0
  %v626 = vsel %vm236, %v617, 0.0
  %v627 = vsel %vm237, %v623, 0.0
  %628 = vrot.lane.b32.xlu0 %v524, 113
  %v629 = vpop.permute.xlu0 %628
  %630 = vrot.lane.b32.xlu0 %v525, 113
  %v631 = vpop.permute.xlu0 %630
  %632 = vrot.lane.b32.xlu0 %v526, 113
  %v633 = vpop.permute.xlu0 %632
  %634 = vrot.lane.b32.xlu0 %v527, 113
  %v635 = vpop.permute.xlu0 %634
  %v636 = vsel %vm292, %v629, %v631
  %v637 = vsel %vm292, %v633, %v635
  %v642 = vsel %vm292, %v631, 0.0
  %v643 = vsel %vm292, %v635, 0.0
  %v644 = vsel %vm192, %v636, 0.0
  %v645 = vsel %vm193, %v642, 0.0
  %v646 = vsel %vm192, %v637, 0.0
  %v647 = vsel %vm193, %v643, 0.0
  %648 = vrot.lane.b32.xlu0 %v524, 112
  %v649 = vpop.permute.xlu0 %648
  %650 = vrot.lane.b32.xlu0 %v525, 112
  %v651 = vpop.permute.xlu0 %650
  %652 = vrot.lane.b32.xlu0 %v526, 112
  %v653 = vpop.permute.xlu0 %652
  %654 = vrot.lane.b32.xlu0 %v527, 112
  %v655 = vpop.permute.xlu0 %654
  %v656 = vsel %vm313, %v649, %v651
  %v657 = vsel %vm313, %v653, %v655
  %v662 = vsel %vm313, %v651, 0.0
  %v663 = vsel %vm313, %v655, 0.0
  %664 = vrot.lane.b32.xlu0 %v524, 111
  %v665 = vpop.permute.xlu0 %664
  %666 = vrot.lane.b32.xlu0 %v525, 111
  %v667 = vpop.permute.xlu0 %666
  %668 = vrot.lane.b32.xlu0 %v526, 111
  %v669 = vpop.permute.xlu0 %668
  %670 = vrot.lane.b32.xlu0 %v527, 111
  %v671 = vpop.permute.xlu0 %670
  %v672 = vsel %vm330, %v665, %v667
  %v673 = vsel %vm330, %v669, %v671
  %v678 = vsel %vm330, %v667, 0.0
  %v679 = vsel %vm330, %v671, 0.0
  %v680 = vsel %vm236, %v672, 0.0
  %v681 = vsel %vm237, %v678, 0.0
  %v682 = vsel %vm236, %v673, 0.0
  %v683 = vsel %vm237, %v679, 0.0
  %684 = vmatprep.subr.mxu0 %v663
  %685 = vmatpush1.msra.mxu0 %v657
  %686 = vmatprep.subr.mxu0 %v662
  %687 = vmatpush1.msra.mxu0 %v656
  %688 = vmatprep.subr.mxu0 %v647
  %689 = vmatpush1.msra.mxu0 %v646
  %690 = vmatprep.subr.mxu0 %v645
  %691 = vmatpush1.msra.mxu0 %v644
  %692 = vmatprep.subr.mxu0 %v627
  %693 = vmatpush1.msra.mxu0 %v626
  %694 = vmatprep.subr.mxu0 %v625
  %695 = vmatpush1.msra.mxu0 %v624
  %696 = vmatprep.subr.mxu0 %v527
  %697 = vmatpush1.msra.mxu0 %v526
  %698 = vmatprep.subr.mxu0 %v525
  %699 = vmatpush1.msra.mxu0 %v524
  %700 = vmatprep.subr.mxu0 %v607
  %701 = vmatpush1.msra.mxu0 %v606
  %702 = vmatprep.subr.mxu0 %v605
  %703 = vmatpush1.msra.mxu0 %v604
  %704 = vmatprep.subr.mxu0 %v587
  %705 = vmatpush1.msra.mxu0 %v586
  %706 = vmatprep.subr.mxu0 %v585
  %707 = vmatpush1.msra.mxu0 %v584
  %708 = vmatprep.subr.mxu0 %v561
  %709 = vmatpush1.msra.mxu0 %v567
  %710 = vmatprep.subr.mxu0 %v560
  %711 = vmatpush1.msra.mxu0 %v566
  %712 = vmatprep.subr.mxu0 %v551
  %713 = vmatpush1.msra.mxu0 %v550
  %714 = vmatprep.subr.mxu0 %v549
  %715 = vmatpush1.msra.mxu0 %v548
  %716 = vmatprep.subr.mxu0 0.0
  %717 = vmatpush2.msra.mxu0 0.0
  %718 = vmatprep.subr.mxu0 0.0
  %719 = vmatpush2.msra.mxu0 0.0
  %720 = vmatprep.subr.mxu0 0.0
  %721 = vmatpush2.msra.mxu0 0.0
  %722 = vmatprep.subr.mxu0 0.0
  %723 = vmatpush2.msra.mxu0 0.0
  %724 = vmatprep.subr.mxu0 0.0
  %725 = vmatpush2.msra.mxu0 0.0
  %726 = vmatprep.subr.mxu0 0.0
  %727 = vmatpush2.msra.mxu0 0.0
  %728 = vmatprep.subr.mxu0 0.0
  %729 = vmatpush2.msra.mxu0 0.0
  %730 = vmatprep.subr.mxu0 0.0
  %731 = vmatpush2.msra.mxu0 0.0
  %732 = vmatprep.subr.mxu0 0.0
  %733 = vmatpush2.msra.mxu0 0.0
  %734 = vmatprep.subr.mxu0 0.0
  %735 = vmatpush2.msra.mxu0 0.0
  %736 = vmatprep.subr.mxu0 0.0
  %737 = vmatpush2.msra.mxu0 0.0
  %738 = vmatprep.subr.mxu0 0.0
  %739 = vmatpush2.msra.mxu0 0.0
  %740 = vmatprep.subr.mxu0 0.0
  %741 = vmatpush2.msra.mxu0 0.0
  %742 = vmatprep.subr.mxu0 0.0
  %743 = vmatpush2.msra.mxu0 0.0
  %744 = vmatprep.subr.mxu0 %v683
  %745 = vmatpush2.msra.mxu0 %v682
  %746 = vmatprep.subr.mxu0 %v681
  %747 = vmatpush2.msra.mxu0 %v680
  %748 = vmatprep.mubr.f32.mxu0 %v364
  %749 = vmatmul.mubr.f32.gmra.mxu0 %v100
  %v750 = vpop.f32.mrf.mxu0
  %v751 = vadd.f32 %v346, %v750
  %v752 = vpop.f32.mrf.mxu0
  %v753 = vadd.f32 %v346, %v752
  %754 = vmatprep.mubr.f32.mxu0 %v367
  %755 = vmatmul.mubr.f32.gmra.mxu0 %v102
  %v756 = vpop.f32.mrf.mxu0
  %v757 = vadd.f32 %v351, %v756
  %v758 = vpop.f32.mrf.mxu0
  %v759 = vadd.f32 %v351, %v758
  %760 = vmatprep.mubr.f32.mxu0 %v370
  %761 = vmatmul.mubr.f32.gmra.mxu0 %v104
  %v762 = vpop.f32.mrf.mxu0
  %v763 = vadd.f32 %v356, %v762
  %v764 = vpop.f32.mrf.mxu0
  %v765 = vadd.f32 %v356, %v764
  %766 = vmatprep.mubr.f32.mxu0 %v373
  %767 = vmatmul.mubr.f32.gmra.mxu0 %v106
  %v768 = vpop.f32.mrf.mxu0
  %v769 = vadd.f32 %v361, %v768
  %v770 = vpop.f32.mrf.mxu0
  %v771 = vadd.f32 %v361, %v770
  %772 = vdwg.mxu0
  %v773 = vmax.f32 %v751, 0.0
  %v774 = vmax.f32 %v753, 0.0
  %v775 = vmax.f32 %v757, 0.0
  %v776 = vmax.f32 %v759, 0.0
  %v777 = vmax.f32 %v763, 0.0
  %v778 = vmax.f32 %v765, 0.0
  %v779 = vmax.f32 %v769, 0.0
  %v780 = vmax.f32 %v771, 0.0
  %s781 = scalar_lea.vmem %s7, 64
  %782 = vst [vmem:[%s781] sm:$0xff] %v773
  %783 = vst [vmem:[%s781 + $0x8] sm:$0xff] %v774
  %784 = vst [vmem:[%s781 + $0x10] sm:$0xff] %v775
  %785 = vst [vmem:[%s781 + $0x18] sm:$0xff] %v776
  %786 = vst [vmem:[%s781 + $0x20] sm:$0xff] %v777
  %787 = vst [vmem:[%s781 + $0x28] sm:$0xff] %v778
  %788 = vst [vmem:[%s781 + $0x30] sm:$0xff] %v779
  %789 = vst [vmem:[%s781 + $0x38] sm:$0xff] %v780
  %v790 = vadd.f32 %v773, %v774
  %791 = vadd.xlane.f32.xlu0 %v790
  %v792 = vpop.xlane.xlu0 %791
  %v793 = vadd.f32 %v775, %v776
  %794 = vadd.xlane.f32.xlu0 %v793
  %v795 = vpop.xlane.xlu0 %794
  %v796 = vadd.f32 %v777, %v778
  %797 = vadd.xlane.f32.xlu0 %v796
  %v798 = vpop.xlane.xlu0 %797
  %v799 = vadd.f32 %v779, %v780
  %800 = vadd.xlane.f32.xlu0 %v799
  %v801 = vpop.xlane.xlu0 %800
  %v802 = vmul.f32 %v773, %v773
  %v803 = vmul.f32 %v774, %v774
  %v804 = vmul.f32 %v775, %v775
  %v805 = vmul.f32 %v776, %v776
  %v806 = vmul.f32 %v777, %v777
  %v807 = vmul.f32 %v778, %v778
  %v808 = vmul.f32 %v779, %v779
  %v809 = vmul.f32 %v780, %v780
  %v810 = vadd.f32 %v802, %v803
  %811 = vadd.xlane.f32.xlu0 %v810
  %v812 = vpop.xlane.xlu0 %811
  %v813 = vadd.f32 %v804, %v805
  %814 = vadd.xlane.f32.xlu0 %v813
  %v815 = vpop.xlane.xlu0 %814
  %v816 = vadd.f32 %v806, %v807
  %817 = vadd.xlane.f32.xlu0 %v816
  %v818 = vpop.xlane.xlu0 %817
  %v819 = vadd.f32 %v808, %v809
  %820 = vadd.xlane.f32.xlu0 %v819
  %v821 = vpop.xlane.xlu0 %820
  %v822 = vadd.f32 %v518, %v792
  %v823 = vadd.f32 %v519, %v812
  %v824 = vadd.f32 %v822, %v795
  %v825 = vadd.f32 %v823, %v815
  %v826 = vadd.f32 %v824, %v798
  %v827 = vadd.f32 %v825, %v818
  %v828 = vadd.f32 %v826, %v801
  %v829 = vadd.f32 %v827, %v821
  %v830 = vrcp.pop 2048.0
  %v831 = vmul.f32 %v828, %v830
  %v832 = vmul.f32 %v829, %v830
  %v833 = vmul.f32 %v831, %v831
  %v834 = vsub.f32 %v832, %v833
  %v835 = vld [vmem:[%s5] sm:$0xff]
  %v836 = vadd.f32 %v834, 1e-05
  %v837 = vrsqrt.pop %v836
  %v838 = vmul.f32 %v835, %v837
  %839 = vst.msk [vmem:[%s8] sm:$0xff] %vm250, %v838
  %v840 = vld [vmem:[%s6] sm:$0xff]
  %v841 = vmul.f32 %v831, %v838
  %v842 = vsub.f32 %v840, %v841
  %843 = vst.msk [vmem:[%s9] sm:$0xff] %vm250, %v842
  // Predicated region
  $region30: #{upsample_conv_forward.2} parent=0 // pred_check
    _
  $region31: #{upsample_conv_forward.2} parent=0 // pred_check_branch
    %845 = sbr.rel (0) target = $region33
  $region32: #{upsample_conv_forward.2} parent=0 // pred_region
    _
  $region33: #{upsample_conv_forward.2} parent=0 // pred_fallthru
    _
  // Predicated region
  $region34: #{upsample_conv_forward.2} parent=0 // pred_check
    _
  $region35: #{upsample_conv_forward.2} parent=0 // pred_check_branch
    %847 = sbr.rel (0) target = $region37
  $region36: #{upsample_conv_forward.2} parent=0 // pred_region
    _
  $region37: #{upsample_conv_forward.2} parent=0 // pred_fallthru
    _
  // Predicated region
  $region38: #{upsample_conv_forward.2} parent=0 // pred_check
    _
  $region39: #{upsample_conv_forward.2} parent=0 // pred_check_branch
    %849 = sbr.rel (0) target = $region41
  $region40: #{upsample_conv_forward.2} parent=0 // pred_region
    _
  $region41: #{upsample_conv_forward.2} parent=0 // pred_fallthru
    _
  // Predicated region
  $region42: #{upsample_conv_forward.2} parent=0 // pred_check
    _
  $region43: #{upsample_conv_forward.2} parent=0 // pred_check_branch
    %851 = sbr.rel (0) target = $region45
  $region44: #{upsample_conv_forward.2} parent=0 // pred_region
    _
  $region45: #{upsample_conv_forward.2} parent=0 // pred_fallthru
    _
  // Predicated region
  $region46: #{upsample_conv_forward.2} parent=0 // pred_check
    _
  $region47: #{upsample_conv_forward.2} parent=0 // pred_check_branch
    %853 = sbr.rel (0) target = $region49
  $region48: #{upsample_conv_forward.2} parent=0 // pred_region
    _
  $region49: #{upsample_conv_forward.2} parent=0 // pred_fallthru
    _
  // Predicated region
  $region50: #{upsample_conv_forward.2} parent=0 // pred_check
    _
  $region51: #{upsample_conv_forward.2} parent=0 // pred_check_branch
    %855 = sbr.rel (0) target = $region53
  $region52: #{upsample_conv_forward.2} parent=0 // pred_region
    _
  $region53: #{upsample_conv_forward.2} parent=0 // pred_fallthru
    _

</llo_original>
